<compile_context>
chip_gen: v7x
topology: tpu7x:2x2x1
jax: 0.10.0
libtpu: 0.0.40
codegen_flags: <defaults>
</compile_context>

<pallas_src>
import functools
import math

import numpy as np
import jax
import jax.numpy as jnp
from jax.experimental import pallas as pl
from jax.experimental.pallas import tpu as pltpu

LN_EPS = 1e-6   # layer_norm_eps of nn.LayerNorm
GN_EPS = 1e-6   # group_norm_eps inside MultiScaleRetention


@functools.lru_cache(maxsize=1)
def _vmem_limit_bytes():
    """Per-chip scoped-VMEM budget (~75% of physical, capped); None -> default."""
    try:
        cap = int(pltpu.get_tpu_info().vmem_capacity_bytes)
        return int(min(100 * 1024 * 1024, (cap * 3) // 4))
    except Exception:
        return None


# ---------------------------------------------------------------------------
# Fused RetNetDecoderLayer.forward_parallel
# ---------------------------------------------------------------------------
def _layer_kernel(
    x_ref,
    pos_r_ref, pos_c_ref, seq_r_ref, seq_c_ref,
    sin_ref, cos_ref, rot_ref,
    ln1_w_ref, ln1_b_ref,
    wqkvg_ref, bqkvg_ref,
    wo_ref, bo_ref,
    ln2_w_ref, ln2_b_ref,
    w1_ref, b1_ref, w2_ref, b2_ref,
    out_ref,
    *, num_heads, head_dim, log_gammas,
):
    """One RetNetDecoderLayer on a block of whole (packed) sequences."""
    f32 = jnp.float32
    bf16 = jnp.bfloat16

    x = x_ref[...]                                      # (TM, D) f32
    d_model = x.shape[1]
    scale = 1.0 / math.sqrt(head_dim)

    # ---- LayerNorm 1 (pre-norm, f32) ----
    mu = jnp.mean(x, axis=-1, keepdims=True)
    var = jnp.mean((x - mu) ** 2, axis=-1, keepdims=True)
    xn = (x - mu) * jax.lax.rsqrt(var + LN_EPS) * ln1_w_ref[...] + ln1_b_ref[...]

    # ---- fused Q/K/V/G projection: one (TM, D) x (D, 4D) bf16 matmul ----
    qkvg = jnp.dot(xn.astype(bf16), wqkvg_ref[...],
                   preferred_element_type=f32) + bqkvg_ref[...]
    q = qkvg[:, 0 * d_model:1 * d_model]
    k = qkvg[:, 1 * d_model:2 * d_model]
    v = qkvg[:, 2 * d_model:3 * d_model]
    g = qkvg[:, 3 * d_model:4 * d_model]

    # ---- xPos relative-position rotation, applied full-width ----
    sin = sin_ref[...]                                  # (TM, D) f32
    cos = cos_ref[...]
    rot = rot_ref[...]                                  # (D, D) bf16 (0 / +-1)
    q = q * cos + jnp.dot(q.astype(bf16), rot, preferred_element_type=f32) * sin
    k = (k * cos + jnp.dot(k.astype(bf16), rot,
                           preferred_element_type=f32) * sin) * scale

    qb = q.astype(bf16)
    kb = k.astype(bf16)
    vb = v.astype(bf16)

    # ---- causal per-head decay computed in-kernel (no (H,N,N) HBM input) ----
    dist = pos_r_ref[...] - pos_c_ref[...]              # (TM, TM) f32
    valid = (seq_r_ref[...] == seq_c_ref[...]) & (dist >= 0.0)
    dist_c = jnp.maximum(dist, 0.0)                     # clamp before exp

    reto = jnp.zeros_like(x)                            # f32 accumulator (TM, D)
    for h in range(num_heads):
        lo = h * head_dim
        hi = lo + head_dim
        dec = jnp.where(valid, jnp.exp(dist_c * log_gammas[h]), 0.0)
        sim = jax.lax.dot_general(
            qb[:, lo:hi], kb[:, lo:hi], (((1,), (1,)), ((), ())),
            preferred_element_type=f32) * dec           # (TM, TM) f32
        rh = jnp.dot(sim.astype(bf16), vb[:, lo:hi],
                     preferred_element_type=f32)        # (TM, hd) f32
        # GroupNorm(num_groups=H, affine=False): per (token, head) over hd.
        m = jnp.mean(rh, axis=-1, keepdims=True)
        s2 = jnp.mean((rh - m) ** 2, axis=-1, keepdims=True)
        rh = (rh - m) * jax.lax.rsqrt(s2 + GN_EPS)
        # swish gate for this head
        gh = g[:, lo:hi]
        gated = rh * (gh * jax.nn.sigmoid(gh))
        # fold the output projection into the head loop: accumulate
        # full-width in f32 (no masked sub-lane-width stores).
        reto = reto + jnp.dot(gated.astype(bf16), wo_ref[h],
                              preferred_element_type=f32)

    h1 = x + reto + bo_ref[...]                         # residual 1

    # ---- LayerNorm 2 + swish feed-forward ----
    mu2 = jnp.mean(h1, axis=-1, keepdims=True)
    var2 = jnp.mean((h1 - mu2) ** 2, axis=-1, keepdims=True)
    hn = (h1 - mu2) * jax.lax.rsqrt(var2 + LN_EPS) * ln2_w_ref[...] + ln2_b_ref[...]

    ff = jnp.dot(hn.astype(bf16), w1_ref[...],
                 preferred_element_type=f32) + b1_ref[...]
    ff = ff * jax.nn.sigmoid(ff)
    ff = jnp.dot(ff.astype(bf16), w2_ref[...],
                 preferred_element_type=f32) + b2_ref[...]

    out_ref[...] = h1 + ff                              # residual 2


def decoder_layer(x2d, lp, consts, *, num_heads, log_gammas):
    """x2d: (B*N, D) f32 residual stream (whole sequences packed in rows)."""
    bn, d_model = x2d.shape
    tm = consts["sin"].shape[0]                         # rows per grid step
    assert bn % tm == 0
    head_dim = d_model // num_heads
    ff_dim = lp["w1"].shape[1]
    grid = (bn // tm,)

    kernel = functools.partial(
        _layer_kernel, num_heads=num_heads, head_dim=head_dim,
        log_gammas=log_gammas)

    def cspec(shape):
        nd = len(shape)
        return pl.BlockSpec(shape, lambda i, _nd=nd: (0,) * _nd)

    in_specs = [
        pl.BlockSpec((tm, d_model), lambda i: (i, 0)),        # x
        cspec((tm, 1)), cspec((1, tm)),                       # pos row / col
        cspec((tm, 1)), cspec((1, tm)),                       # seq row / col
        cspec((tm, d_model)), cspec((tm, d_model)),           # sin, cos
        cspec((d_model, d_model)),                            # rot (bf16)
        cspec((1, d_model)), cspec((1, d_model)),             # ln1 w, b
        cspec((d_model, 4 * d_model)), cspec((1, 4 * d_model)),   # qkvg
        cspec((num_heads, head_dim, d_model)), cspec((1, d_model)),  # wo, bo
        cspec((1, d_model)), cspec((1, d_model)),             # ln2 w, b
        cspec((d_model, ff_dim)), cspec((1, ff_dim)),         # linear1
        cspec((ff_dim, d_model)), cspec((1, d_model)),        # linear2
    ]

    return pl.pallas_call(
        kernel,
        out_shape=jax.ShapeDtypeStruct((bn, d_model), jnp.float32),
        grid=grid,
        in_specs=in_specs,
        out_specs=pl.BlockSpec((tm, d_model), lambda i: (i, 0)),
        compiler_params=pltpu.CompilerParams(
            dimension_semantics=("parallel",),
            vmem_limit_bytes=_vmem_limit_bytes()),
    )(
        x2d,
        consts["pos_r"], consts["pos_c"], consts["seq_r"], consts["seq_c"],
        consts["sin"], consts["cos"], consts["rot"],
        lp["ln1_w"], lp["ln1_b"],
        lp["wqkvg"], lp["bqkvg"],
        lp["wo"], lp["bo"],
        lp["ln2_w"], lp["ln2_b"],
        lp["w1"], lp["b1"], lp["w2"], lp["b2"],
    )


# ---------------------------------------------------------------------------
# Output projection fused with cross-entropy (online logsumexp over vocab tiles)
# ---------------------------------------------------------------------------
def _ce_kernel(x_ref, lbl_ref, w_ref, b_ref, loss_ref, m_sc, l_sc, p_sc,
               *, vocab_block, vocab_size):
    vb = pl.program_id(1)

    @pl.when(vb == 0)
    def _():
        m_sc[...] = jnp.full_like(m_sc, -jnp.inf)
        l_sc[...] = jnp.zeros_like(l_sc)
        p_sc[...] = jnp.zeros_like(p_sc)

    logits = (jnp.dot(x_ref[...].astype(jnp.bfloat16), w_ref[...],
                      preferred_element_type=jnp.float32) + b_ref[...])
    col = jax.lax.broadcasted_iota(jnp.int32, logits.shape, 1) + vb * vocab_block
    logits = jnp.where(col < vocab_size, logits, -jnp.inf)   # mask padded cols

    # picked (label) logit contribution from this vocab tile
    hit = col == lbl_ref[...]
    p_sc[...] += jnp.sum(jnp.where(hit, logits, 0.0), axis=-1, keepdims=True)

    # online logsumexp
    m_prev = m_sc[...]
    m_new = jnp.maximum(m_prev, jnp.max(logits, axis=-1, keepdims=True))
    l_sc[...] = (l_sc[...] * jnp.exp(m_prev - m_new)
                 + jnp.sum(jnp.exp(logits - m_new), axis=-1, keepdims=True))
    m_sc[...] = m_new

    @pl.when(vb == pl.num_programs(1) - 1)
    def _():
        loss_ref[...] = m_sc[...] + jnp.log(l_sc[...]) - p_sc[...]


def out_projection_ce_loss(x2d, labels_flat, w, b):
    """Per-token cross-entropy of (x2d @ w + b) vs labels, then mean."""
    bn, d_model = x2d.shape
    vocab = w.shape[1]
    row_block = min(bn, 256)
    vocab_block = vocab if vocab <= 512 else 512
    grid = (pl.cdiv(bn, row_block), pl.cdiv(vocab, vocab_block))

    lbl2d = labels_flat.reshape(-1, 1).astype(jnp.int32)
    kernel = functools.partial(
        _ce_kernel, vocab_block=vocab_block, vocab_size=vocab)

    per_row = pl.pallas_call(
        kernel,
        out_shape=jax.ShapeDtypeStruct((bn, 1), jnp.float32),
        grid=grid,
        in_specs=[
            pl.BlockSpec((row_block, d_model), lambda r, v: (r, 0)),
            pl.BlockSpec((row_block, 1), lambda r, v: (r, 0)),
            pl.BlockSpec((d_model, vocab_block), lambda r, v: (0, v)),
            pl.BlockSpec((1, vocab_block), lambda r, v: (0, v)),
        ],
        out_specs=pl.BlockSpec((row_block, 1), lambda r, v: (r, 0)),
        scratch_shapes=[pltpu.VMEM((row_block, 1), jnp.float32)] * 3,
        compiler_params=pltpu.CompilerParams(
            dimension_semantics=("parallel", "arbitrary"),
            vmem_limit_bytes=_vmem_limit_bytes()),
    )(x2d, lbl2d, w, b)
    return jnp.mean(per_row)


# ---------------------------------------------------------------------------
# Constants, parameters, and the full forward pass
# ---------------------------------------------------------------------------
def build_consts(batch, seq_len, d_model, num_heads, max_rows_per_block=256):
    """Trace-time constants: packed positions/seq-ids, xPos sin/cos, rotation
    matrix, and per-head log-gammas (Python floats, baked into the kernel)."""
    head_dim = d_model // num_heads

    # pack as many whole sequences per grid step as fit in the row budget
    bpb = 1
    limit = max(seq_len, max_rows_per_block)
    for d in range(batch, 0, -1):
        if batch % d == 0 and d * seq_len <= limit:
            bpb = d
            break
    tm = bpb * seq_len

    pos = np.tile(np.arange(seq_len, dtype=np.float32), bpb)        # (tm,)
    seq = np.repeat(np.arange(bpb, dtype=np.float32), seq_len)      # (tm,)

    # xPos thetas, repeated per pair and tiled over heads -> full width D.
    theta = 10000.0 ** (-2.0 * np.arange(head_dim // 2) / head_dim)
    thetas = np.tile(np.repeat(theta, 2), num_heads)                # (D,)
    angles = np.arange(seq_len)[:, None] * thetas[None, :]          # (N, D)
    sin = np.tile(np.sin(angles), (bpb, 1)).astype(np.float32)      # (tm, D)
    cos = np.tile(np.cos(angles), (bpb, 1)).astype(np.float32)

    # Block-diagonal matrix realizing rotate_every_two(x) == x @ rot.
    rot = np.zeros((d_model, d_model), np.float32)
    for i in range(d_model // 2):
        rot[2 * i + 1, 2 * i] = -1.0
        rot[2 * i, 2 * i + 1] = 1.0

    # Per-head decay gammas (RetNet paper); exact trace-time constants.
    xs = np.linspace(math.log(1 / 32), math.log(1 / 512), num_heads)
    gammas = 1.0 - np.exp(xs)
    log_gammas = tuple(float(np.log(g)) for g in gammas)

    consts = {
        "pos_r": jnp.asarray(pos.reshape(tm, 1)),
        "pos_c": jnp.asarray(pos.reshape(1, tm)),
        "seq_r": jnp.asarray(seq.reshape(tm, 1)),
        "seq_c": jnp.asarray(seq.reshape(1, tm)),
        "sin": jnp.asarray(sin),
        "cos": jnp.asarray(cos),
        "rot": jnp.asarray(rot, jnp.bfloat16),
    }
    return consts, log_gammas


def _xavier(key, fan_in, fan_out):
    std = math.sqrt(2.0 / (fan_in + fan_out))
    return std * jax.random.normal(key, (fan_in, fan_out), dtype=jnp.float32)


def init_params(key, num_tokens, d_model, nhead, num_layers, dim_feedforward):
    head_dim = d_model // nhead
    bf16 = jnp.bfloat16
    keys = jax.random.split(key, 2 + num_layers)
    params = {
        "embedding": jax.random.normal(keys[0], (num_tokens, d_model), jnp.float32),
        "out_w": _xavier(keys[1], d_model, num_tokens).astype(bf16),
        "out_b": jnp.zeros((1, num_tokens), jnp.float32),
        "layers": [],
    }
    for i in range(num_layers):
        lk = jax.random.split(keys[2 + i], 7)
        wq = _xavier(lk[0], d_model, d_model)
        wk = _xavier(lk[1], d_model, d_model)
        wv = _xavier(lk[2], d_model, d_model)
        wg = _xavier(lk[3], d_model, d_model)
        lp = {
            "ln1_w": jnp.ones((1, d_model), jnp.float32),
            "ln1_b": jnp.zeros((1, d_model), jnp.float32),
            "ln2_w": jnp.ones((1, d_model), jnp.float32),
            "ln2_b": jnp.zeros((1, d_model), jnp.float32),
            # fused Q/K/V/G projection weight (D, 4D), bf16
            "wqkvg": jnp.concatenate([wq, wk, wv, wg], axis=1).astype(bf16),
            "bqkvg": jnp.zeros((1, 4 * d_model), jnp.float32),
            # output projection stored per-head: (H, hd, D), bf16
            "wo": _xavier(lk[4], d_model, d_model)
                  .reshape(nhead, head_dim, d_model).astype(bf16),
            "bo": jnp.zeros((1, d_model), jnp.float32),
            "w1": _xavier(lk[5], d_model, dim_feedforward).astype(bf16),
            "b1": jnp.zeros((1, dim_feedforward), jnp.float32),
            "w2": _xavier(lk[6], dim_feedforward, d_model).astype(bf16),
            "b2": jnp.zeros((1, d_model), jnp.float32),
        }
        params["layers"].append(lp)
    return params


def retnet_forward_loss(inputs, labels, params, consts, *, num_heads, log_gammas):
    """RetNet.forward(inputs, labels): embedding -> decoder -> out -> CE loss."""
    x = jnp.take(params["embedding"], inputs.reshape(-1), axis=0)   # (B*N, D)
    for lp in params["layers"]:
        x = decoder_layer(x, lp, consts,
                          num_heads=num_heads, log_gammas=log_gammas)
    return out_projection_ce_loss(
        x, labels.reshape(-1), params["out_w"], params["out_b"])


if __name__ == "__main__":
    NUM_TOKENS, D_MODEL, NHEAD, NUM_LAYERS, FF = 64, 32, 4, 2, 128
    B, N = 2, 8

    key = jax.random.PRNGKey(0)
    pkey, ikey, lkey = jax.random.split(key, 3)
    params = init_params(pkey, NUM_TOKENS, D_MODEL, NHEAD, NUM_LAYERS, FF)
    consts, log_gammas = build_consts(B, N, D_MODEL, NHEAD)

    inputs = jax.random.randint(ikey, (B, N), 0, NUM_TOKENS, dtype=jnp.int32)
    labels = jax.random.randint(lkey, (B, N), 0, NUM_TOKENS, dtype=jnp.int32)

    loss_fn = jax.jit(lambda i, l, p, c: retnet_forward_loss(
        i, l, p, c, num_heads=NHEAD, log_gammas=log_gammas))
    loss = loss_fn(inputs, labels, params, consts)
    jax.block_until_ready(loss)
    assert bool(jnp.isfinite(loss))
    print("KERNEL_OK")
</pallas_src>

<mosaic_0001>
module attributes {stable_mosaic.version = 11 : i64} {
  func.func @_ce_kernel(%arg0: i32, %arg1: i32, %arg2: memref<16x32xf32, #tpu.memory_space<vmem>>, %arg3: memref<16x1xi32, #tpu.memory_space<vmem>>, %arg4: memref<32x64xbf16, #tpu.memory_space<vmem>>, %arg5: memref<1x64xf32, #tpu.memory_space<vmem>>, %arg6: memref<16x1xf32, #tpu.memory_space<vmem>>, %arg7: memref<16x1xf32, #tpu.memory_space<vmem>>, %arg8: memref<16x1xf32, #tpu.memory_space<vmem>>, %arg9: memref<16x1xf32, #tpu.memory_space<vmem>>) attributes {dimension_semantics = [#tpu.dimension_semantics<parallel>, #tpu.dimension_semantics<arbitrary>], iteration_bounds = array<i64: 1, 1>, scalar_prefetch = 0 : i64, scratch_operands = 3 : i64, tpu.core_type = #tpu.core_type<tc>, window_params = [{transform_indices = @transform_0, window_bounds = array<i64: 16, 32>}, {transform_indices = @transform_1, window_bounds = array<i64: 16, 1>}, {transform_indices = @transform_2, window_bounds = array<i64: 32, 64>}, {transform_indices = @transform_3, window_bounds = array<i64: 1, 64>}, {transform_indices = @transform_4, window_bounds = array<i64: 16, 1>}]} {
    %c0_i32 = arith.constant 0 : i32
    %0 = arith.cmpi eq, %arg1, %c0_i32 : i32
    %1 = arith.extui %0 : i1 to i32
    %c0_i32_0 = arith.constant 0 : i32
    %2 = arith.cmpi ne, %1, %c0_i32_0 : i32
    scf.if %2 {
      %cst_28 = arith.constant 0xFF800000 : f32
      %47 = vector.broadcast %cst_28 : f32 to vector<16x1xf32>
      %c0_29 = arith.constant 0 : index
      %c0_30 = arith.constant 0 : index
      %48 = vector.load %arg7[%c0_29, %c0_30] : memref<16x1xf32, #tpu.memory_space<vmem>>, vector<16x1xf32>
      tpu.vector_store %arg7[%c0_29, %c0_30], %47 {strides = array<i32>} : memref<16x1xf32, #tpu.memory_space<vmem>>, vector<16x1xf32>,
      %cst_31 = arith.constant 0.000000e+00 : f32
      %49 = vector.broadcast %cst_31 : f32 to vector<16x1xf32>
      %c0_32 = arith.constant 0 : index
      %c0_33 = arith.constant 0 : index
      %50 = vector.load %arg8[%c0_32, %c0_33] : memref<16x1xf32, #tpu.memory_space<vmem>>, vector<16x1xf32>
      tpu.vector_store %arg8[%c0_32, %c0_33], %49 {strides = array<i32>} : memref<16x1xf32, #tpu.memory_space<vmem>>, vector<16x1xf32>,
      %cst_34 = arith.constant 0.000000e+00 : f32
      %51 = vector.broadcast %cst_34 : f32 to vector<16x1xf32>
      %c0_35 = arith.constant 0 : index
      %c0_36 = arith.constant 0 : index
      %52 = vector.load %arg9[%c0_35, %c0_36] : memref<16x1xf32, #tpu.memory_space<vmem>>, vector<16x1xf32>
      tpu.vector_store %arg9[%c0_35, %c0_36], %51 {strides = array<i32>} : memref<16x1xf32, #tpu.memory_space<vmem>>, vector<16x1xf32>,
    } else {
    }
    %c0 = arith.constant 0 : index
    %c0_1 = arith.constant 0 : index
    %3 = vector.load %arg2[%c0, %c0_1] : memref<16x32xf32, #tpu.memory_space<vmem>>, vector<16x32xf32>
    %4 = arith.truncf %3 : vector<16x32xf32> to vector<16x32xbf16>
    %c0_2 = arith.constant 0 : index
    %c0_3 = arith.constant 0 : index
    %5 = vector.load %arg4[%c0_2, %c0_3] : memref<32x64xbf16, #tpu.memory_space<vmem>>, vector<32x64xbf16>
    %cst = arith.constant dense<0.000000e+00> : vector<16x64xf32>
    %6 = tpu.matmul %4, %5, %cst {dimension_numbers = #tpu.dot_dimension_numbers<[1], [0], [0], [1], [0, 0, 1, 1], [], []>} : vector<16x32xbf16>, vector<32x64xbf16>, vector<16x64xf32> -> vector<16x64xf32>
    %c0_4 = arith.constant 0 : index
    %c0_5 = arith.constant 0 : index
    %7 = vector.load %arg5[%c0_4, %c0_5] : memref<1x64xf32, #tpu.memory_space<vmem>>, vector<1x64xf32>
    %8 = vector.broadcast %7 : vector<1x64xf32> to vector<16x64xf32>
    %9 = arith.addf %6, %8 : vector<16x64xf32>
    %10 = tpu.iota {dimensions = array<i32: 1>} : vector<16x64xi32>
    %c64_i32 = arith.constant 64 : i32
    %11 = arith.muli %arg1, %c64_i32 : i32
    %12 = vector.broadcast %11 : i32 to vector<16x64xi32>
    %13 = arith.addi %10, %12 : vector<16x64xi32>
    %c64_i32_6 = arith.constant 64 : i32
    %14 = vector.broadcast %c64_i32_6 : i32 to vector<16x64xi32>
    %15 = arith.cmpi slt, %13, %14 : vector<16x64xi32>
    %cst_7 = arith.constant 0xFF800000 : f32
    %16 = vector.broadcast %cst_7 : f32 to vector<16x64xf32>
    %17 = arith.select %15, %9, %16 : vector<16x64xi1>, vector<16x64xf32>
    %c0_8 = arith.constant 0 : index
    %c0_9 = arith.constant 0 : index
    %18 = vector.load %arg3[%c0_8, %c0_9] : memref<16x1xi32, #tpu.memory_space<vmem>>, vector<16x1xi32>
    %19 = vector.broadcast %18 : vector<16x1xi32> to vector<16x64xi32>
    %20 = arith.cmpi eq, %13, %19 : vector<16x64xi32>
    %c0_10 = arith.constant 0 : index
    %c0_11 = arith.constant 0 : index
    %21 = vector.load %arg9[%c0_10, %c0_11] : memref<16x1xf32, #tpu.memory_space<vmem>>, vector<16x1xf32>
    %cst_12 = arith.constant 0.000000e+00 : f32
    %22 = vector.broadcast %cst_12 : f32 to vector<16x64xf32>
    %23 = arith.select %20, %17, %22 : vector<16x64xi1>, vector<16x64xf32>
    %cst_13 = arith.constant dense<0.000000e+00> : vector<16xf32>
    %24 = vector.multi_reduction <add>, %23, %cst_13 [1] : vector<16x64xf32> to vector<16xf32>
    %25 = vector.shape_cast %24 : vector<16xf32> to vector<16x1xf32>
    %26 = arith.addf %21, %25 : vector<16x1xf32>
    %c0_14 = arith.constant 0 : index
    %c0_15 = arith.constant 0 : index
    %27 = vector.load %arg9[%c0_14, %c0_15] : memref<16x1xf32, #tpu.memory_space<vmem>>, vector<16x1xf32>
    tpu.vector_store %arg9[%c0_14, %c0_15], %26 {strides = array<i32>} : memref<16x1xf32, #tpu.memory_space<vmem>>, vector<16x1xf32>,
    %c0_16 = arith.constant 0 : index
    %c0_17 = arith.constant 0 : index
    %28 = vector.load %arg7[%c0_16, %c0_17] : memref<16x1xf32, #tpu.memory_space<vmem>>, vector<16x1xf32>
    %cst_18 = arith.constant dense<0xFF800000> : vector<16xf32>
    %29 = vector.multi_reduction <maximumf>, %17, %cst_18 [1] : vector<16x64xf32> to vector<16xf32>
    %30 = vector.shape_cast %29 : vector<16xf32> to vector<16x1xf32>
    %31 = arith.maximumf %28, %30 : vector<16x1xf32>
    %c0_19 = arith.constant 0 : index
    %c0_20 = arith.constant 0 : index
    %32 = vector.load %arg8[%c0_19, %c0_20] : memref<16x1xf32, #tpu.memory_space<vmem>>, vector<16x1xf32>
    %33 = arith.subf %28, %31 : vector<16x1xf32>
    %34 = math.exp %33 : vector<16x1xf32>
    %35 = arith.mulf %32, %34 : vector<16x1xf32>
    %36 = vector.broadcast %31 : vector<16x1xf32> to vector<16x64xf32>
    %37 = arith.subf %17, %36 : vector<16x64xf32>
    %38 = math.exp %37 : vector<16x64xf32>
    %cst_21 = arith.constant dense<0.000000e+00> : vector<16xf32>
    %39 = vector.multi_reduction <add>, %38, %cst_21 [1] : vector<16x64xf32> to vector<16xf32>
    %40 = vector.shape_cast %39 : vector<16xf32> to vector<16x1xf32>
    %41 = arith.addf %35, %40 : vector<16x1xf32>
    %c0_22 = arith.constant 0 : index
    %c0_23 = arith.constant 0 : index
    %42 = vector.load %arg8[%c0_22, %c0_23] : memref<16x1xf32, #tpu.memory_space<vmem>>, vector<16x1xf32>
    tpu.vector_store %arg8[%c0_22, %c0_23], %41 {strides = array<i32>} : memref<16x1xf32, #tpu.memory_space<vmem>>, vector<16x1xf32>,
    %c0_24 = arith.constant 0 : index
    %c0_25 = arith.constant 0 : index
    %43 = vector.load %arg7[%c0_24, %c0_25] : memref<16x1xf32, #tpu.memory_space<vmem>>, vector<16x1xf32>
    tpu.vector_store %arg7[%c0_24, %c0_25], %31 {strides = array<i32>} : memref<16x1xf32, #tpu.memory_space<vmem>>, vector<16x1xf32>,
    %c0_i32_26 = arith.constant 0 : i32
    %44 = arith.cmpi eq, %arg1, %c0_i32_26 : i32
    %45 = arith.extui %44 : i1 to i32
    %c0_i32_27 = arith.constant 0 : i32
    %46 = arith.cmpi ne, %45, %c0_i32_27 : i32
    scf.if %46 {
      %c0_28 = arith.constant 0 : index
      %c0_29 = arith.constant 0 : index
      %47 = vector.load %arg7[%c0_28, %c0_29] : memref<16x1xf32, #tpu.memory_space<vmem>>, vector<16x1xf32>
      %c0_30 = arith.constant 0 : index
      %c0_31 = arith.constant 0 : index
      %48 = vector.load %arg8[%c0_30, %c0_31] : memref<16x1xf32, #tpu.memory_space<vmem>>, vector<16x1xf32>
      %49 = math.log %48 : vector<16x1xf32>
      %50 = arith.addf %47, %49 : vector<16x1xf32>
      %c0_32 = arith.constant 0 : index
      %c0_33 = arith.constant 0 : index
      %51 = vector.load %arg9[%c0_32, %c0_33] : memref<16x1xf32, #tpu.memory_space<vmem>>, vector<16x1xf32>
      %52 = arith.subf %50, %51 : vector<16x1xf32>
      %c0_34 = arith.constant 0 : index
      %c0_35 = arith.constant 0 : index
      %53 = vector.load %arg6[%c0_34, %c0_35] : memref<16x1xf32, #tpu.memory_space<vmem>>, vector<16x1xf32>
      tpu.vector_store %arg6[%c0_34, %c0_35], %52 {strides = array<i32>} : memref<16x1xf32, #tpu.memory_space<vmem>>, vector<16x1xf32>,
    } else {
    }
    return
  }
  func.func @transform_0(%arg0: i32, %arg1: i32) -> (i32, i32) {
    %c0_i32 = arith.constant 0 : i32
    %c0_i32_0 = arith.constant 0 : i32
    return %arg0, %c0_i32 : i32, i32
  }
  func.func @transform_1(%arg0: i32, %arg1: i32) -> (i32, i32) {
    %c0_i32 = arith.constant 0 : i32
    %c0_i32_0 = arith.constant 0 : i32
    return %arg0, %c0_i32 : i32, i32
  }
  func.func @transform_2(%arg0: i32, %arg1: i32) -> (i32, i32) {
    %c0_i32 = arith.constant 0 : i32
    %c0_i32_0 = arith.constant 0 : i32
    return %c0_i32, %arg1 : i32, i32
  }
  func.func @transform_3(%arg0: i32, %arg1: i32) -> (i32, i32) {
    %c0_i32 = arith.constant 0 : i32
    %c0_i32_0 = arith.constant 0 : i32
    return %c0_i32, %arg1 : i32, i32
  }
  func.func @transform_4(%arg0: i32, %arg1: i32) -> (i32, i32) {
    %c0_i32 = arith.constant 0 : i32
    %c0_i32_0 = arith.constant 0 : i32
    return %arg0, %c0_i32 : i32, i32
  }
}

module attributes {stable_mosaic.version = 11 : i64} {
  func.func @_layer_kernel(%arg0: i32, %arg1: memref<16x32xf32, #tpu.memory_space<vmem>>, %arg2: memref<16x1xf32, #tpu.memory_space<vmem>>, %arg3: memref<1x16xf32, #tpu.memory_space<vmem>>, %arg4: memref<16x1xf32, #tpu.memory_space<vmem>>, %arg5: memref<1x16xf32, #tpu.memory_space<vmem>>, %arg6: memref<16x32xf32, #tpu.memory_space<vmem>>, %arg7: memref<16x32xf32, #tpu.memory_space<vmem>>, %arg8: memref<32x32xbf16, #tpu.memory_space<vmem>>, %arg9: memref<1x32xf32, #tpu.memory_space<vmem>>, %arg10: memref<1x32xf32, #tpu.memory_space<vmem>>, %arg11: memref<32x128xbf16, #tpu.memory_space<vmem>>, %arg12: memref<1x128xf32, #tpu.memory_space<vmem>>, %arg13: memref<4x8x32xbf16, #tpu.memory_space<vmem>>, %arg14: memref<1x32xf32, #tpu.memory_space<vmem>>, %arg15: memref<1x32xf32, #tpu.memory_space<vmem>>, %arg16: memref<1x32xf32, #tpu.memory_space<vmem>>, %arg17: memref<32x128xbf16, #tpu.memory_space<vmem>>, %arg18: memref<1x128xf32, #tpu.memory_space<vmem>>, %arg19: memref<128x32xbf16, #tpu.memory_space<vmem>>, %arg20: memref<1x32xf32, #tpu.memory_space<vmem>>, %arg21: memref<16x32xf32, #tpu.memory_space<vmem>>) attributes {dimension_semantics = [#tpu.dimension_semantics<parallel>], iteration_bounds = array<i64: 1>, scalar_prefetch = 0 : i64, scratch_operands = 0 : i64, tpu.core_type = #tpu.core_type<tc>, window_params = [{transform_indices = @transform_0, window_bounds = array<i64: 16, 32>}, {pipeline_mode = #tpu.pipeline_mode<synchronous>, transform_indices = @transform_1, window_bounds = array<i64: 16, 1>}, {pipeline_mode = #tpu.pipeline_mode<synchronous>, transform_indices = @transform_2, window_bounds = array<i64: 1, 16>}, {pipeline_mode = #tpu.pipeline_mode<synchronous>, transform_indices = @transform_3, window_bounds = array<i64: 16, 1>}, {pipeline_mode = #tpu.pipeline_mode<synchronous>, transform_indices = @transform_4, window_bounds = array<i64: 1, 16>}, {pipeline_mode = #tpu.pipeline_mode<synchronous>, transform_indices = @transform_5, window_bounds = array<i64: 16, 32>}, {pipeline_mode = #tpu.pipeline_mode<synchronous>, transform_indices = @transform_6, window_bounds = array<i64: 16, 32>}, {pipeline_mode = #tpu.pipeline_mode<synchronous>, transform_indices = @transform_7, window_bounds = array<i64: 32, 32>}, {pipeline_mode = #tpu.pipeline_mode<synchronous>, transform_indices = @transform_8, window_bounds = array<i64: 1, 32>}, {pipeline_mode = #tpu.pipeline_mode<synchronous>, transform_indices = @transform_9, window_bounds = array<i64: 1, 32>}, {pipeline_mode = #tpu.pipeline_mode<synchronous>, transform_indices = @transform_10, window_bounds = array<i64: 32, 128>}, {pipeline_mode = #tpu.pipeline_mode<synchronous>, transform_indices = @transform_11, window_bounds = array<i64: 1, 128>}, {pipeline_mode = #tpu.pipeline_mode<synchronous>, transform_indices = @transform_12, window_bounds = array<i64: 4, 8, 32>}, {pipeline_mode = #tpu.pipeline_mode<synchronous>, transform_indices = @transform_13, window_bounds = array<i64: 1, 32>}, {pipeline_mode = #tpu.pipeline_mode<synchronous>, transform_indices = @transform_14, window_bounds = array<i64: 1, 32>}, {pipeline_mode = #tpu.pipeline_mode<synchronous>, transform_indices = @transform_15, window_bounds = array<i64: 1, 32>}, {pipeline_mode = #tpu.pipeline_mode<synchronous>, transform_indices = @transform_16, window_bounds = array<i64: 32, 128>}, {pipeline_mode = #tpu.pipeline_mode<synchronous>, transform_indices = @transform_17, window_bounds = array<i64: 1, 128>}, {pipeline_mode = #tpu.pipeline_mode<synchronous>, transform_indices = @transform_18, window_bounds = array<i64: 128, 32>}, {pipeline_mode = #tpu.pipeline_mode<synchronous>, transform_indices = @transform_19, window_bounds = array<i64: 1, 32>}, {transform_indices = @transform_20, window_bounds = array<i64: 16, 32>}]} {
    %c0 = arith.constant 0 : index
    %c0_0 = arith.constant 0 : index
    %0 = vector.load %arg1[%c0, %c0_0] : memref<16x32xf32, #tpu.memory_space<vmem>>, vector<16x32xf32>
    %cst = arith.constant dense<0.000000e+00> : vector<16xf32>
    %1 = vector.multi_reduction <add>, %0, %cst [1] : vector<16x32xf32> to vector<16xf32>
    %2 = vector.shape_cast %1 : vector<16xf32> to vector<16x1xf32>
    %cst_1 = arith.constant 3.200000e+01 : f32
    %3 = vector.broadcast %cst_1 : f32 to vector<16x1xf32>
    %4 = arith.divf %2, %3 : vector<16x1xf32>
    %5 = vector.broadcast %4 : vector<16x1xf32> to vector<16x32xf32>
    %6 = arith.subf %0, %5 : vector<16x32xf32>
    %7 = arith.mulf %6, %6 : vector<16x32xf32>
    %cst_2 = arith.constant dense<0.000000e+00> : vector<16xf32>
    %8 = vector.multi_reduction <add>, %7, %cst_2 [1] : vector<16x32xf32> to vector<16xf32>
    %9 = vector.shape_cast %8 : vector<16xf32> to vector<16x1xf32>
    %cst_3 = arith.constant 3.200000e+01 : f32
    %10 = vector.broadcast %cst_3 : f32 to vector<16x1xf32>
    %11 = arith.divf %9, %10 : vector<16x1xf32>
    %12 = vector.broadcast %4 : vector<16x1xf32> to vector<16x32xf32>
    %13 = arith.subf %0, %12 : vector<16x32xf32>
    %cst_4 = arith.constant 9.99999997E-7 : f32
    %14 = vector.broadcast %cst_4 : f32 to vector<16x1xf32>
    %15 = arith.addf %11, %14 : vector<16x1xf32>
    %16 = math.rsqrt %15 : vector<16x1xf32>
    %17 = vector.broadcast %16 : vector<16x1xf32> to vector<16x32xf32>
    %18 = arith.mulf %13, %17 : vector<16x32xf32>
    %c0_5 = arith.constant 0 : index
    %c0_6 = arith.constant 0 : index
    %19 = vector.load %arg9[%c0_5, %c0_6] : memref<1x32xf32, #tpu.memory_space<vmem>>, vector<1x32xf32>
    %20 = vector.broadcast %19 : vector<1x32xf32> to vector<16x32xf32>
    %21 = arith.mulf %18, %20 : vector<16x32xf32>
    %c0_7 = arith.constant 0 : index
    %c0_8 = arith.constant 0 : index
    %22 = vector.load %arg10[%c0_7, %c0_8] : memref<1x32xf32, #tpu.memory_space<vmem>>, vector<1x32xf32>
    %23 = vector.broadcast %22 : vector<1x32xf32> to vector<16x32xf32>
    %24 = arith.addf %21, %23 : vector<16x32xf32>
    %25 = arith.truncf %24 : vector<16x32xf32> to vector<16x32xbf16>
    %c0_9 = arith.constant 0 : index
    %c0_10 = arith.constant 0 : index
    %26 = vector.load %arg11[%c0_9, %c0_10] : memref<32x128xbf16, #tpu.memory_space<vmem>>, vector<32x128xbf16>
    %cst_11 = arith.constant dense<0.000000e+00> : vector<16x128xf32>
    %27 = tpu.matmul %25, %26, %cst_11 {dimension_numbers = #tpu.dot_dimension_numbers<[1], [0], [0], [1], [0, 0, 1, 1], [], []>} : vector<16x32xbf16>, vector<32x128xbf16>, vector<16x128xf32> -> vector<16x128xf32>
    %c0_12 = arith.constant 0 : index
    %c0_13 = arith.constant 0 : index
    %28 = vector.load %arg12[%c0_12, %c0_13] : memref<1x128xf32, #tpu.memory_space<vmem>>, vector<1x128xf32>
    %29 = vector.broadcast %28 : vector<1x128xf32> to vector<16x128xf32>
    %30 = arith.addf %27, %29 : vector<16x128xf32>
    %31 = vector.extract_strided_slice %30 {offsets = [0, 0], sizes = [16, 32], strides = [1, 1]} : vector<16x128xf32> to vector<16x32xf32>
    %32 = vector.extract_strided_slice %30 {offsets = [0, 32], sizes = [16, 32], strides = [1, 1]} : vector<16x128xf32> to vector<16x32xf32>
    %33 = vector.extract_strided_slice %30 {offsets = [0, 64], sizes = [16, 32], strides = [1, 1]} : vector<16x128xf32> to vector<16x32xf32>
    %34 = vector.extract_strided_slice %30 {offsets = [0, 96], sizes = [16, 32], strides = [1, 1]} : vector<16x128xf32> to vector<16x32xf32>
    %c0_14 = arith.constant 0 : index
    %c0_15 = arith.constant 0 : index
    %35 = vector.load %arg6[%c0_14, %c0_15] : memref<16x32xf32, #tpu.memory_space<vmem>>, vector<16x32xf32>
    %c0_16 = arith.constant 0 : index
    %c0_17 = arith.constant 0 : index
    %36 = vector.load %arg7[%c0_16, %c0_17] : memref<16x32xf32, #tpu.memory_space<vmem>>, vector<16x32xf32>
    %c0_18 = arith.constant 0 : index
    %c0_19 = arith.constant 0 : index
    %37 = vector.load %arg8[%c0_18, %c0_19] : memref<32x32xbf16, #tpu.memory_space<vmem>>, vector<32x32xbf16>
    %38 = arith.mulf %31, %36 : vector<16x32xf32>
    %39 = arith.truncf %31 : vector<16x32xf32> to vector<16x32xbf16>
    %cst_20 = arith.constant dense<0.000000e+00> : vector<16x32xf32>
    %40 = tpu.matmul %39, %37, %cst_20 {dimension_numbers = #tpu.dot_dimension_numbers<[1], [0], [0], [1], [0, 0, 1, 1], [], []>} : vector<16x32xbf16>, vector<32x32xbf16>, vector<16x32xf32> -> vector<16x32xf32>
    %41 = arith.mulf %40, %35 : vector<16x32xf32>
    %42 = arith.addf %38, %41 : vector<16x32xf32>
    %43 = arith.mulf %32, %36 : vector<16x32xf32>
    %44 = arith.truncf %32 : vector<16x32xf32> to vector<16x32xbf16>
    %cst_21 = arith.constant dense<0.000000e+00> : vector<16x32xf32>
    %45 = tpu.matmul %44, %37, %cst_21 {dimension_numbers = #tpu.dot_dimension_numbers<[1], [0], [0], [1], [0, 0, 1, 1], [], []>} : vector<16x32xbf16>, vector<32x32xbf16>, vector<16x32xf32> -> vector<16x32xf32>
    %46 = arith.mulf %45, %35 : vector<16x32xf32>
    %47 = arith.addf %43, %46 : vector<16x32xf32>
    %cst_22 = arith.constant 0.353553385 : f32
    %48 = vector.broadcast %cst_22 : f32 to vector<16x32xf32>
    %49 = arith.mulf %47, %48 : vector<16x32xf32>
    %50 = arith.truncf %42 : vector<16x32xf32> to vector<16x32xbf16>
    %51 = arith.truncf %49 : vector<16x32xf32> to vector<16x32xbf16>
    %52 = arith.truncf %33 : vector<16x32xf32> to vector<16x32xbf16>
    %c0_23 = arith.constant 0 : index
    %c0_24 = arith.constant 0 : index
    %53 = vector.load %arg2[%c0_23, %c0_24] : memref<16x1xf32, #tpu.memory_space<vmem>>, vector<16x1xf32>
    %c0_25 = arith.constant 0 : index
    %c0_26 = arith.constant 0 : index
    %54 = vector.load %arg3[%c0_25, %c0_26] : memref<1x16xf32, #tpu.memory_space<vmem>>, vector<1x16xf32>
    %55 = vector.broadcast %53 : vector<16x1xf32> to vector<16x16xf32>
    %56 = vector.broadcast %54 : vector<1x16xf32> to vector<16x16xf32>
    %57 = arith.subf %55, %56 : vector<16x16xf32>
    %c0_27 = arith.constant 0 : index
    %c0_28 = arith.constant 0 : index
    %58 = vector.load %arg4[%c0_27, %c0_28] : memref<16x1xf32, #tpu.memory_space<vmem>>, vector<16x1xf32>
    %c0_29 = arith.constant 0 : index
    %c0_30 = arith.constant 0 : index
    %59 = vector.load %arg5[%c0_29, %c0_30] : memref<1x16xf32, #tpu.memory_space<vmem>>, vector<1x16xf32>
    %60 = vector.broadcast %58 : vector<16x1xf32> to vector<16x16xf32>
    %61 = vector.broadcast %59 : vector<1x16xf32> to vector<16x16xf32>
    %62 = arith.cmpf oeq, %60, %61 : vector<16x16xf32>
    %cst_31 = arith.constant 0.000000e+00 : f32
    %63 = vector.broadcast %cst_31 : f32 to vector<16x16xf32>
    %64 = arith.cmpf oge, %57, %63 : vector<16x16xf32>
    %65 = arith.andi %62, %64 : vector<16x16xi1>
    %cst_32 = arith.constant 0.000000e+00 : f32
    %66 = vector.broadcast %cst_32 : f32 to vector<16x16xf32>
    %67 = arith.maximumf %57, %66 : vector<16x16xf32>
    %cst_33 = arith.constant 0.000000e+00 : f32
    %68 = vector.broadcast %cst_33 : f32 to vector<16x32xf32>
    %cst_34 = arith.constant -0.0317486972 : f32
    %69 = vector.broadcast %cst_34 : f32 to vector<16x16xf32>
    %70 = arith.mulf %67, %69 : vector<16x16xf32>
    %71 = math.exp %70 : vector<16x16xf32>
    %cst_35 = arith.constant 0.000000e+00 : f32
    %72 = vector.broadcast %cst_35 : f32 to vector<16x16xf32>
    %73 = arith.select %65, %71, %72 : vector<16x16xi1>, vector<16x16xf32>
    %74 = vector.extract_strided_slice %50 {offsets = [0, 0], sizes = [16, 8], strides = [1, 1]} : vector<16x32xbf16> to vector<16x8xbf16>
    %75 = vector.extract_strided_slice %51 {offsets = [0, 0], sizes = [16, 8], strides = [1, 1]} : vector<16x32xbf16> to vector<16x8xbf16>
    %cst_36 = arith.constant dense<0.000000e+00> : vector<16x16xf32>
    %76 = tpu.matmul %74, %75, %cst_36 {dimension_numbers = #tpu.dot_dimension_numbers<[1], [1], [0], [0], [0, 0, 1, 0], [], []>} : vector<16x8xbf16>, vector<16x8xbf16>, vector<16x16xf32> -> vector<16x16xf32>
    %77 = arith.mulf %76, %73 : vector<16x16xf32>
    %78 = arith.truncf %77 : vector<16x16xf32> to vector<16x16xbf16>
    %79 = vector.extract_strided_slice %52 {offsets = [0, 0], sizes = [16, 8], strides = [1, 1]} : vector<16x32xbf16> to vector<16x8xbf16>
    %cst_37 = arith.constant dense<0.000000e+00> : vector<16x8xf32>
    %80 = tpu.matmul %78, %79, %cst_37 {dimension_numbers = #tpu.dot_dimension_numbers<[1], [0], [0], [1], [0, 0, 1, 1], [], []>} : vector<16x16xbf16>, vector<16x8xbf16>, vector<16x8xf32> -> vector<16x8xf32>
    %cst_38 = arith.constant dense<0.000000e+00> : vector<16xf32>
    %81 = vector.multi_reduction <add>, %80, %cst_38 [1] : vector<16x8xf32> to vector<16xf32>
    %82 = vector.shape_cast %81 : vector<16xf32> to vector<16x1xf32>
    %cst_39 = arith.constant 8.000000e+00 : f32
    %83 = vector.broadcast %cst_39 : f32 to vector<16x1xf32>
    %84 = arith.divf %82, %83 : vector<16x1xf32>
    %85 = vector.broadcast %84 : vector<16x1xf32> to vector<16x8xf32>
    %86 = arith.subf %80, %85 : vector<16x8xf32>
    %87 = arith.mulf %86, %86 : vector<16x8xf32>
    %cst_40 = arith.constant dense<0.000000e+00> : vector<16xf32>
    %88 = vector.multi_reduction <add>, %87, %cst_40 [1] : vector<16x8xf32> to vector<16xf32>
    %89 = vector.shape_cast %88 : vector<16xf32> to vector<16x1xf32>
    %cst_41 = arith.constant 8.000000e+00 : f32
    %90 = vector.broadcast %cst_41 : f32 to vector<16x1xf32>
    %91 = arith.divf %89, %90 : vector<16x1xf32>
    %92 = vector.broadcast %84 : vector<16x1xf32> to vector<16x8xf32>
    %93 = arith.subf %80, %92 : vector<16x8xf32>
    %cst_42 = arith.constant 9.99999997E-7 : f32
    %94 = vector.broadcast %cst_42 : f32 to vector<16x1xf32>
    %95 = arith.addf %91, %94 : vector<16x1xf32>
    %96 = math.rsqrt %95 : vector<16x1xf32>
    %97 = vector.broadcast %96 : vector<16x1xf32> to vector<16x8xf32>
    %98 = arith.mulf %93, %97 : vector<16x8xf32>
    %99 = vector.extract_strided_slice %34 {offsets = [0, 0], sizes = [16, 8], strides = [1, 1]} : vector<16x32xf32> to vector<16x8xf32>
    %100 = arith.negf %99 : vector<16x8xf32>
    %101 = math.exp %100 : vector<16x8xf32>
    %cst_43 = arith.constant 1.000000e+00 : f32
    %102 = vector.broadcast %cst_43 : f32 to vector<16x8xf32>
    %103 = arith.addf %102, %101 : vector<16x8xf32>
    %104 = arith.divf %102, %103 : vector<16x8xf32>
    %105 = arith.mulf %99, %104 : vector<16x8xf32>
    %106 = arith.mulf %98, %105 : vector<16x8xf32>
    %107 = arith.truncf %106 : vector<16x8xf32> to vector<16x8xbf16>
    %c0_44 = arith.constant 0 : index
    %c0_45 = arith.constant 0 : index
    %c0_46 = arith.constant 0 : index
    %108 = vector.load %arg13[%c0_44, %c0_45, %c0_46] : memref<4x8x32xbf16, #tpu.memory_space<vmem>>, vector<1x8x32xbf16>
    %109 = vector.shape_cast %108 : vector<1x8x32xbf16> to vector<8x32xbf16>
    %cst_47 = arith.constant dense<0.000000e+00> : vector<16x32xf32>
    %110 = tpu.matmul %107, %109, %cst_47 {dimension_numbers = #tpu.dot_dimension_numbers<[1], [0], [0], [1], [0, 0, 1, 1], [], []>} : vector<16x8xbf16>, vector<8x32xbf16>, vector<16x32xf32> -> vector<16x32xf32>
    %111 = arith.addf %68, %110 : vector<16x32xf32>
    %cst_48 = arith.constant -0.0124791116 : f32
    %112 = vector.broadcast %cst_48 : f32 to vector<16x16xf32>
    %113 = arith.mulf %67, %112 : vector<16x16xf32>
    %114 = math.exp %113 : vector<16x16xf32>
    %cst_49 = arith.constant 0.000000e+00 : f32
    %115 = vector.broadcast %cst_49 : f32 to vector<16x16xf32>
    %116 = arith.select %65, %114, %115 : vector<16x16xi1>, vector<16x16xf32>
    %117 = vector.extract_strided_slice %50 {offsets = [0, 8], sizes = [16, 8], strides = [1, 1]} : vector<16x32xbf16> to vector<16x8xbf16>
    %118 = vector.extract_strided_slice %51 {offsets = [0, 8], sizes = [16, 8], strides = [1, 1]} : vector<16x32xbf16> to vector<16x8xbf16>
    %cst_50 = arith.constant dense<0.000000e+00> : vector<16x16xf32>
    %119 = tpu.matmul %117, %118, %cst_50 {dimension_numbers = #tpu.dot_dimension_numbers<[1], [1], [0], [0], [0, 0, 1, 0], [], []>} : vector<16x8xbf16>, vector<16x8xbf16>, vector<16x16xf32> -> vector<16x16xf32>
    %120 = arith.mulf %119, %116 : vector<16x16xf32>
    %121 = arith.truncf %120 : vector<16x16xf32> to vector<16x16xbf16>
    %122 = vector.extract_strided_slice %52 {offsets = [0, 8], sizes = [16, 8], strides = [1, 1]} : vector<16x32xbf16> to vector<16x8xbf16>
    %cst_51 = arith.constant dense<0.000000e+00> : vector<16x8xf32>
    %123 = tpu.matmul %121, %122, %cst_51 {dimension_numbers = #tpu.dot_dimension_numbers<[1], [0], [0], [1], [0, 0, 1, 1], [], []>} : vector<16x16xbf16>, vector<16x8xbf16>, vector<16x8xf32> -> vector<16x8xf32>
    %cst_52 = arith.constant dense<0.000000e+00> : vector<16xf32>
    %124 = vector.multi_reduction <add>, %123, %cst_52 [1] : vector<16x8xf32> to vector<16xf32>
    %125 = vector.shape_cast %124 : vector<16xf32> to vector<16x1xf32>
    %cst_53 = arith.constant 8.000000e+00 : f32
    %126 = vector.broadcast %cst_53 : f32 to vector<16x1xf32>
    %127 = arith.divf %125, %126 : vector<16x1xf32>
    %128 = vector.broadcast %127 : vector<16x1xf32> to vector<16x8xf32>
    %129 = arith.subf %123, %128 : vector<16x8xf32>
    %130 = arith.mulf %129, %129 : vector<16x8xf32>
    %cst_54 = arith.constant dense<0.000000e+00> : vector<16xf32>
    %131 = vector.multi_reduction <add>, %130, %cst_54 [1] : vector<16x8xf32> to vector<16xf32>
    %132 = vector.shape_cast %131 : vector<16xf32> to vector<16x1xf32>
    %cst_55 = arith.constant 8.000000e+00 : f32
    %133 = vector.broadcast %cst_55 : f32 to vector<16x1xf32>
    %134 = arith.divf %132, %133 : vector<16x1xf32>
    %135 = vector.broadcast %127 : vector<16x1xf32> to vector<16x8xf32>
    %136 = arith.subf %123, %135 : vector<16x8xf32>
    %cst_56 = arith.constant 9.99999997E-7 : f32
    %137 = vector.broadcast %cst_56 : f32 to vector<16x1xf32>
    %138 = arith.addf %134, %137 : vector<16x1xf32>
    %139 = math.rsqrt %138 : vector<16x1xf32>
    %140 = vector.broadcast %139 : vector<16x1xf32> to vector<16x8xf32>
    %141 = arith.mulf %136, %140 : vector<16x8xf32>
    %142 = vector.extract_strided_slice %34 {offsets = [0, 8], sizes = [16, 8], strides = [1, 1]} : vector<16x32xf32> to vector<16x8xf32>
    %143 = arith.negf %142 : vector<16x8xf32>
    %144 = math.exp %143 : vector<16x8xf32>
    %cst_57 = arith.constant 1.000000e+00 : f32
    %145 = vector.broadcast %cst_57 : f32 to vector<16x8xf32>
    %146 = arith.addf %145, %144 : vector<16x8xf32>
    %147 = arith.divf %145, %146 : vector<16x8xf32>
    %148 = arith.mulf %142, %147 : vector<16x8xf32>
    %149 = arith.mulf %141, %148 : vector<16x8xf32>
    %150 = arith.truncf %149 : vector<16x8xf32> to vector<16x8xbf16>
    %c1 = arith.constant 1 : index
    %c0_58 = arith.constant 0 : index
    %c0_59 = arith.constant 0 : index
    %151 = vector.load %arg13[%c1, %c0_58, %c0_59] : memref<4x8x32xbf16, #tpu.memory_space<vmem>>, vector<1x8x32xbf16>
    %152 = vector.shape_cast %151 : vector<1x8x32xbf16> to vector<8x32xbf16>
    %cst_60 = arith.constant dense<0.000000e+00> : vector<16x32xf32>
    %153 = tpu.matmul %150, %152, %cst_60 {dimension_numbers = #tpu.dot_dimension_numbers<[1], [0], [0], [1], [0, 0, 1, 1], [], []>} : vector<16x8xbf16>, vector<8x32xbf16>, vector<16x32xf32> -> vector<16x32xf32>
    %154 = arith.addf %111, %153 : vector<16x32xf32>
    %cst_61 = arith.constant -0.00493371719 : f32
    %155 = vector.broadcast %cst_61 : f32 to vector<16x16xf32>
    %156 = arith.mulf %67, %155 : vector<16x16xf32>
    %157 = math.exp %156 : vector<16x16xf32>
    %cst_62 = arith.constant 0.000000e+00 : f32
    %158 = vector.broadcast %cst_62 : f32 to vector<16x16xf32>
    %159 = arith.select %65, %157, %158 : vector<16x16xi1>, vector<16x16xf32>
    %160 = vector.extract_strided_slice %50 {offsets = [0, 16], sizes = [16, 8], strides = [1, 1]} : vector<16x32xbf16> to vector<16x8xbf16>
    %161 = vector.extract_strided_slice %51 {offsets = [0, 16], sizes = [16, 8], strides = [1, 1]} : vector<16x32xbf16> to vector<16x8xbf16>
    %cst_63 = arith.constant dense<0.000000e+00> : vector<16x16xf32>
    %162 = tpu.matmul %160, %161, %cst_63 {dimension_numbers = #tpu.dot_dimension_numbers<[1], [1], [0], [0], [0, 0, 1, 0], [], []>} : vector<16x8xbf16>, vector<16x8xbf16>, vector<16x16xf32> -> vector<16x16xf32>
    %163 = arith.mulf %162, %159 : vector<16x16xf32>
    %164 = arith.truncf %163 : vector<16x16xf32> to vector<16x16xbf16>
    %165 = vector.extract_strided_slice %52 {offsets = [0, 16], sizes = [16, 8], strides = [1, 1]} : vector<16x32xbf16> to vector<16x8xbf16>
    %cst_64 = arith.constant dense<0.000000e+00> : vector<16x8xf32>
    %166 = tpu.matmul %164, %165, %cst_64 {dimension_numbers = #tpu.dot_dimension_numbers<[1], [0], [0], [1], [0, 0, 1, 1], [], []>} : vector<16x16xbf16>, vector<16x8xbf16>, vector<16x8xf32> -> vector<16x8xf32>
    %cst_65 = arith.constant dense<0.000000e+00> : vector<16xf32>
    %167 = vector.multi_reduction <add>, %166, %cst_65 [1] : vector<16x8xf32> to vector<16xf32>
    %168 = vector.shape_cast %167 : vector<16xf32> to vector<16x1xf32>
    %cst_66 = arith.constant 8.000000e+00 : f32
    %169 = vector.broadcast %cst_66 : f32 to vector<16x1xf32>
    %170 = arith.divf %168, %169 : vector<16x1xf32>
    %171 = vector.broadcast %170 : vector<16x1xf32> to vector<16x8xf32>
    %172 = arith.subf %166, %171 : vector<16x8xf32>
    %173 = arith.mulf %172, %172 : vector<16x8xf32>
    %cst_67 = arith.constant dense<0.000000e+00> : vector<16xf32>
    %174 = vector.multi_reduction <add>, %173, %cst_67 [1] : vector<16x8xf32> to vector<16xf32>
    %175 = vector.shape_cast %174 : vector<16xf32> to vector<16x1xf32>
    %cst_68 = arith.constant 8.000000e+00 : f32
    %176 = vector.broadcast %cst_68 : f32 to vector<16x1xf32>
    %177 = arith.divf %175, %176 : vector<16x1xf32>
    %178 = vector.broadcast %170 : vector<16x1xf32> to vector<16x8xf32>
    %179 = arith.subf %166, %178 : vector<16x8xf32>
    %cst_69 = arith.constant 9.99999997E-7 : f32
    %180 = vector.broadcast %cst_69 : f32 to vector<16x1xf32>
    %181 = arith.addf %177, %180 : vector<16x1xf32>
    %182 = math.rsqrt %181 : vector<16x1xf32>
    %183 = vector.broadcast %182 : vector<16x1xf32> to vector<16x8xf32>
    %184 = arith.mulf %179, %183 : vector<16x8xf32>
    %185 = vector.extract_strided_slice %34 {offsets = [0, 16], sizes = [16, 8], strides = [1, 1]} : vector<16x32xf32> to vector<16x8xf32>
    %186 = arith.negf %185 : vector<16x8xf32>
    %187 = math.exp %186 : vector<16x8xf32>
    %cst_70 = arith.constant 1.000000e+00 : f32
    %188 = vector.broadcast %cst_70 : f32 to vector<16x8xf32>
    %189 = arith.addf %188, %187 : vector<16x8xf32>
    %190 = arith.divf %188, %189 : vector<16x8xf32>
    %191 = arith.mulf %185, %190 : vector<16x8xf32>
    %192 = arith.mulf %184, %191 : vector<16x8xf32>
    %193 = arith.truncf %192 : vector<16x8xf32> to vector<16x8xbf16>
    %c2 = arith.constant 2 : index
    %c0_71 = arith.constant 0 : index
    %c0_72 = arith.constant 0 : index
    %194 = vector.load %arg13[%c2, %c0_71, %c0_72] : memref<4x8x32xbf16, #tpu.memory_space<vmem>>, vector<1x8x32xbf16>
    %195 = vector.shape_cast %194 : vector<1x8x32xbf16> to vector<8x32xbf16>
    %cst_73 = arith.constant dense<0.000000e+00> : vector<16x32xf32>
    %196 = tpu.matmul %193, %195, %cst_73 {dimension_numbers = #tpu.dot_dimension_numbers<[1], [0], [0], [1], [0, 0, 1, 1], [], []>} : vector<16x8xbf16>, vector<8x32xbf16>, vector<16x32xf32> -> vector<16x32xf32>
    %197 = arith.addf %154, %196 : vector<16x32xf32>
    %cst_74 = arith.constant -0.00195503491 : f32
    %198 = vector.broadcast %cst_74 : f32 to vector<16x16xf32>
    %199 = arith.mulf %67, %198 : vector<16x16xf32>
    %200 = math.exp %199 : vector<16x16xf32>
    %cst_75 = arith.constant 0.000000e+00 : f32
    %201 = vector.broadcast %cst_75 : f32 to vector<16x16xf32>
    %202 = arith.select %65, %200, %201 : vector<16x16xi1>, vector<16x16xf32>
    %203 = vector.extract_strided_slice %50 {offsets = [0, 24], sizes = [16, 8], strides = [1, 1]} : vector<16x32xbf16> to vector<16x8xbf16>
    %204 = vector.extract_strided_slice %51 {offsets = [0, 24], sizes = [16, 8], strides = [1, 1]} : vector<16x32xbf16> to vector<16x8xbf16>
    %cst_76 = arith.constant dense<0.000000e+00> : vector<16x16xf32>
    %205 = tpu.matmul %203, %204, %cst_76 {dimension_numbers = #tpu.dot_dimension_numbers<[1], [1], [0], [0], [0, 0, 1, 0], [], []>} : vector<16x8xbf16>, vector<16x8xbf16>, vector<16x16xf32> -> vector<16x16xf32>
    %206 = arith.mulf %205, %202 : vector<16x16xf32>
    %207 = arith.truncf %206 : vector<16x16xf32> to vector<16x16xbf16>
    %208 = vector.extract_strided_slice %52 {offsets = [0, 24], sizes = [16, 8], strides = [1, 1]} : vector<16x32xbf16> to vector<16x8xbf16>
    %cst_77 = arith.constant dense<0.000000e+00> : vector<16x8xf32>
    %209 = tpu.matmul %207, %208, %cst_77 {dimension_numbers = #tpu.dot_dimension_numbers<[1], [0], [0], [1], [0, 0, 1, 1], [], []>} : vector<16x16xbf16>, vector<16x8xbf16>, vector<16x8xf32> -> vector<16x8xf32>
    %cst_78 = arith.constant dense<0.000000e+00> : vector<16xf32>
    %210 = vector.multi_reduction <add>, %209, %cst_78 [1] : vector<16x8xf32> to vector<16xf32>
    %211 = vector.shape_cast %210 : vector<16xf32> to vector<16x1xf32>
    %cst_79 = arith.constant 8.000000e+00 : f32
    %212 = vector.broadcast %cst_79 : f32 to vector<16x1xf32>
    %213 = arith.divf %211, %212 : vector<16x1xf32>
    %214 = vector.broadcast %213 : vector<16x1xf32> to vector<16x8xf32>
    %215 = arith.subf %209, %214 : vector<16x8xf32>
    %216 = arith.mulf %215, %215 : vector<16x8xf32>
    %cst_80 = arith.constant dense<0.000000e+00> : vector<16xf32>
    %217 = vector.multi_reduction <add>, %216, %cst_80 [1] : vector<16x8xf32> to vector<16xf32>
    %218 = vector.shape_cast %217 : vector<16xf32> to vector<16x1xf32>
    %cst_81 = arith.constant 8.000000e+00 : f32
    %219 = vector.broadcast %cst_81 : f32 to vector<16x1xf32>
    %220 = arith.divf %218, %219 : vector<16x1xf32>
    %221 = vector.broadcast %213 : vector<16x1xf32> to vector<16x8xf32>
    %222 = arith.subf %209, %221 : vector<16x8xf32>
    %cst_82 = arith.constant 9.99999997E-7 : f32
    %223 = vector.broadcast %cst_82 : f32 to vector<16x1xf32>
    %224 = arith.addf %220, %223 : vector<16x1xf32>
    %225 = math.rsqrt %224 : vector<16x1xf32>
    %226 = vector.broadcast %225 : vector<16x1xf32> to vector<16x8xf32>
    %227 = arith.mulf %222, %226 : vector<16x8xf32>
    %228 = vector.extract_strided_slice %34 {offsets = [0, 24], sizes = [16, 8], strides = [1, 1]} : vector<16x32xf32> to vector<16x8xf32>
    %229 = arith.negf %228 : vector<16x8xf32>
    %230 = math.exp %229 : vector<16x8xf32>
    %cst_83 = arith.constant 1.000000e+00 : f32
    %231 = vector.broadcast %cst_83 : f32 to vector<16x8xf32>
    %232 = arith.addf %231, %230 : vector<16x8xf32>
    %233 = arith.divf %231, %232 : vector<16x8xf32>
    %234 = arith.mulf %228, %233 : vector<16x8xf32>
    %235 = arith.mulf %227, %234 : vector<16x8xf32>
    %236 = arith.truncf %235 : vector<16x8xf32> to vector<16x8xbf16>
    %c3 = arith.constant 3 : index
    %c0_84 = arith.constant 0 : index
    %c0_85 = arith.constant 0 : index
    %237 = vector.load %arg13[%c3, %c0_84, %c0_85] : memref<4x8x32xbf16, #tpu.memory_space<vmem>>, vector<1x8x32xbf16>
    %238 = vector.shape_cast %237 : vector<1x8x32xbf16> to vector<8x32xbf16>
    %cst_86 = arith.constant dense<0.000000e+00> : vector<16x32xf32>
    %239 = tpu.matmul %236, %238, %cst_86 {dimension_numbers = #tpu.dot_dimension_numbers<[1], [0], [0], [1], [0, 0, 1, 1], [], []>} : vector<16x8xbf16>, vector<8x32xbf16>, vector<16x32xf32> -> vector<16x32xf32>
    %240 = arith.addf %197, %239 : vector<16x32xf32>
    %241 = arith.addf %0, %240 : vector<16x32xf32>
    %c0_87 = arith.constant 0 : index
    %c0_88 = arith.constant 0 : index
    %242 = vector.load %arg14[%c0_87, %c0_88] : memref<1x32xf32, #tpu.memory_space<vmem>>, vector<1x32xf32>
    %243 = vector.broadcast %242 : vector<1x32xf32> to vector<16x32xf32>
    %244 = arith.addf %241, %243 : vector<16x32xf32>
    %cst_89 = arith.constant dense<0.000000e+00> : vector<16xf32>
    %245 = vector.multi_reduction <add>, %244, %cst_89 [1] : vector<16x32xf32> to vector<16xf32>
    %246 = vector.shape_cast %245 : vector<16xf32> to vector<16x1xf32>
    %cst_90 = arith.constant 3.200000e+01 : f32
    %247 = vector.broadcast %cst_90 : f32 to vector<16x1xf32>
    %248 = arith.divf %246, %247 : vector<16x1xf32>
    %249 = vector.broadcast %248 : vector<16x1xf32> to vector<16x32xf32>
    %250 = arith.subf %244, %249 : vector<16x32xf32>
    %251 = arith.mulf %250, %250 : vector<16x32xf32>
    %cst_91 = arith.constant dense<0.000000e+00> : vector<16xf32>
    %252 = vector.multi_reduction <add>, %251, %cst_91 [1] : vector<16x32xf32> to vector<16xf32>
    %253 = vector.shape_cast %252 : vector<16xf32> to vector<16x1xf32>
    %cst_92 = arith.constant 3.200000e+01 : f32
    %254 = vector.broadcast %cst_92 : f32 to vector<16x1xf32>
    %255 = arith.divf %253, %254 : vector<16x1xf32>
    %256 = vector.broadcast %248 : vector<16x1xf32> to vector<16x32xf32>
    %257 = arith.subf %244, %256 : vector<16x32xf32>
    %cst_93 = arith.constant 9.99999997E-7 : f32
    %258 = vector.broadcast %cst_93 : f32 to vector<16x1xf32>
    %259 = arith.addf %255, %258 : vector<16x1xf32>
    %260 = math.rsqrt %259 : vector<16x1xf32>
    %261 = vector.broadcast %260 : vector<16x1xf32> to vector<16x32xf32>
    %262 = arith.mulf %257, %261 : vector<16x32xf32>
    %c0_94 = arith.constant 0 : index
    %c0_95 = arith.constant 0 : index
    %263 = vector.load %arg15[%c0_94, %c0_95] : memref<1x32xf32, #tpu.memory_space<vmem>>, vector<1x32xf32>
    %264 = vector.broadcast %263 : vector<1x32xf32> to vector<16x32xf32>
    %265 = arith.mulf %262, %264 : vector<16x32xf32>
    %c0_96 = arith.constant 0 : index
    %c0_97 = arith.constant 0 : index
    %266 = vector.load %arg16[%c0_96, %c0_97] : memref<1x32xf32, #tpu.memory_space<vmem>>, vector<1x32xf32>
    %267 = vector.broadcast %266 : vector<1x32xf32> to vector<16x32xf32>
    %268 = arith.addf %265, %267 : vector<16x32xf32>
    %269 = arith.truncf %268 : vector<16x32xf32> to vector<16x32xbf16>
    %c0_98 = arith.constant 0 : index
    %c0_99 = arith.constant 0 : index
    %270 = vector.load %arg17[%c0_98, %c0_99] : memref<32x128xbf16, #tpu.memory_space<vmem>>, vector<32x128xbf16>
    %cst_100 = arith.constant dense<0.000000e+00> : vector<16x128xf32>
    %271 = tpu.matmul %269, %270, %cst_100 {dimension_numbers = #tpu.dot_dimension_numbers<[1], [0], [0], [1], [0, 0, 1, 1], [], []>} : vector<16x32xbf16>, vector<32x128xbf16>, vector<16x128xf32> -> vector<16x128xf32>
    %c0_101 = arith.constant 0 : index
    %c0_102 = arith.constant 0 : index
    %272 = vector.load %arg18[%c0_101, %c0_102] : memref<1x128xf32, #tpu.memory_space<vmem>>, vector<1x128xf32>
    %273 = vector.broadcast %272 : vector<1x128xf32> to vector<16x128xf32>
    %274 = arith.addf %271, %273 : vector<16x128xf32>
    %275 = arith.negf %274 : vector<16x128xf32>
    %276 = math.exp %275 : vector<16x128xf32>
    %cst_103 = arith.constant 1.000000e+00 : f32
    %277 = vector.broadcast %cst_103 : f32 to vector<16x128xf32>
    %278 = arith.addf %277, %276 : vector<16x128xf32>
    %279 = arith.divf %277, %278 : vector<16x128xf32>
    %280 = arith.mulf %274, %279 : vector<16x128xf32>
    %281 = arith.truncf %280 : vector<16x128xf32> to vector<16x128xbf16>
    %c0_104 = arith.constant 0 : index
    %c0_105 = arith.constant 0 : index
    %282 = vector.load %arg19[%c0_104, %c0_105] : memref<128x32xbf16, #tpu.memory_space<vmem>>, vector<128x32xbf16>
    %cst_106 = arith.constant dense<0.000000e+00> : vector<16x32xf32>
    %283 = tpu.matmul %281, %282, %cst_106 {dimension_numbers = #tpu.dot_dimension_numbers<[1], [0], [0], [1], [0, 0, 1, 1], [], []>} : vector<16x128xbf16>, vector<128x32xbf16>, vector<16x32xf32> -> vector<16x32xf32>
    %c0_107 = arith.constant 0 : index
    %c0_108 = arith.constant 0 : index
    %284 = vector.load %arg20[%c0_107, %c0_108] : memref<1x32xf32, #tpu.memory_space<vmem>>, vector<1x32xf32>
    %285 = vector.broadcast %284 : vector<1x32xf32> to vector<16x32xf32>
    %286 = arith.addf %283, %285 : vector<16x32xf32>
    %287 = arith.addf %244, %286 : vector<16x32xf32>
    %c0_109 = arith.constant 0 : index
    %c0_110 = arith.constant 0 : index
    %288 = vector.load %arg21[%c0_109, %c0_110] : memref<16x32xf32, #tpu.memory_space<vmem>>, vector<16x32xf32>
    tpu.vector_store %arg21[%c0_109, %c0_110], %287 {strides = array<i32>} : memref<16x32xf32, #tpu.memory_space<vmem>>, vector<16x32xf32>,
    return
  }
  func.func @transform_0(%arg0: i32) -> (i32, i32) {
    %c0_i32 = arith.constant 0 : i32
    %c0_i32_0 = arith.constant 0 : i32
    return %arg0, %c0_i32 : i32, i32
  }
  func.func @transform_1(%arg0: i32) -> (i32, i32) {
    %c0_i32 = arith.constant 0 : i32
    %c0_i32_0 = arith.constant 0 : i32
    %c0_i32_1 = arith.constant 0 : i32
    return %c0_i32, %c0_i32_0 : i32, i32
  }
  func.func @transform_2(%arg0: i32) -> (i32, i32) {
    %c0_i32 = arith.constant 0 : i32
    %c0_i32_0 = arith.constant 0 : i32
    %c0_i32_1 = arith.constant 0 : i32
    return %c0_i32, %c0_i32_0 : i32, i32
  }
  func.func @transform_3(%arg0: i32) -> (i32, i32) {
    %c0_i32 = arith.constant 0 : i32
    %c0_i32_0 = arith.constant 0 : i32
    %c0_i32_1 = arith.constant 0 : i32
    return %c0_i32, %c0_i32_0 : i32, i32
  }
  func.func @transform_4(%arg0: i32) -> (i32, i32) {
    %c0_i32 = arith.constant 0 : i32
    %c0_i32_0 = arith.constant 0 : i32
    %c0_i32_1 = arith.constant 0 : i32
    return %c0_i32, %c0_i32_0 : i32, i32
  }
  func.func @transform_5(%arg0: i32) -> (i32, i32) {
    %c0_i32 = arith.constant 0 : i32
    %c0_i32_0 = arith.constant 0 : i32
    %c0_i32_1 = arith.constant 0 : i32
    return %c0_i32, %c0_i32_0 : i32, i32
  }
  func.func @transform_6(%arg0: i32) -> (i32, i32) {
    %c0_i32 = arith.constant 0 : i32
    %c0_i32_0 = arith.constant 0 : i32
    %c0_i32_1 = arith.constant 0 : i32
    return %c0_i32, %c0_i32_0 : i32, i32
  }
  func.func @transform_7(%arg0: i32) -> (i32, i32) {
    %c0_i32 = arith.constant 0 : i32
    %c0_i32_0 = arith.constant 0 : i32
    %c0_i32_1 = arith.constant 0 : i32
    return %c0_i32, %c0_i32_0 : i32, i32
  }
  func.func @transform_8(%arg0: i32) -> (i32, i32) {
    %c0_i32 = arith.constant 0 : i32
    %c0_i32_0 = arith.constant 0 : i32
    %c0_i32_1 = arith.constant 0 : i32
    return %c0_i32, %c0_i32_0 : i32, i32
  }
  func.func @transform_9(%arg0: i32) -> (i32, i32) {
    %c0_i32 = arith.constant 0 : i32
    %c0_i32_0 = arith.constant 0 : i32
    %c0_i32_1 = arith.constant 0 : i32
    return %c0_i32, %c0_i32_0 : i32, i32
  }
  func.func @transform_10(%arg0: i32) -> (i32, i32) {
    %c0_i32 = arith.constant 0 : i32
    %c0_i32_0 = arith.constant 0 : i32
    %c0_i32_1 = arith.constant 0 : i32
    return %c0_i32, %c0_i32_0 : i32, i32
  }
  func.func @transform_11(%arg0: i32) -> (i32, i32) {
    %c0_i32 = arith.constant 0 : i32
    %c0_i32_0 = arith.constant 0 : i32
    %c0_i32_1 = arith.constant 0 : i32
    return %c0_i32, %c0_i32_0 : i32, i32
  }
  func.func @transform_12(%arg0: i32) -> (i32, i32, i32) {
    %c0_i32 = arith.constant 0 : i32
    %c0_i32_0 = arith.constant 0 : i32
    %c0_i32_1 = arith.constant 0 : i32
    %c0_i32_2 = arith.constant 0 : i32
    return %c0_i32, %c0_i32_0, %c0_i32_1 : i32, i32, i32
  }
  func.func @transform_13(%arg0: i32) -> (i32, i32) {
    %c0_i32 = arith.constant 0 : i32
    %c0_i32_0 = arith.constant 0 : i32
    %c0_i32_1 = arith.constant 0 : i32
    return %c0_i32, %c0_i32_0 : i32, i32
  }
  func.func @transform_14(%arg0: i32) -> (i32, i32) {
    %c0_i32 = arith.constant 0 : i32
    %c0_i32_0 = arith.constant 0 : i32
    %c0_i32_1 = arith.constant 0 : i32
    return %c0_i32, %c0_i32_0 : i32, i32
  }
  func.func @transform_15(%arg0: i32) -> (i32, i32) {
    %c0_i32 = arith.constant 0 : i32
    %c0_i32_0 = arith.constant 0 : i32
    %c0_i32_1 = arith.constant 0 : i32
    return %c0_i32, %c0_i32_0 : i32, i32
  }
  func.func @transform_16(%arg0: i32) -> (i32, i32) {
    %c0_i32 = arith.constant 0 : i32
    %c0_i32_0 = arith.constant 0 : i32
    %c0_i32_1 = arith.constant 0 : i32
    return %c0_i32, %c0_i32_0 : i32, i32
  }
  func.func @transform_17(%arg0: i32) -> (i32, i32) {
    %c0_i32 = arith.constant 0 : i32
    %c0_i32_0 = arith.constant 0 : i32
    %c0_i32_1 = arith.constant 0 : i32
    return %c0_i32, %c0_i32_0 : i32, i32
  }
  func.func @transform_18(%arg0: i32) -> (i32, i32) {
    %c0_i32 = arith.constant 0 : i32
    %c0_i32_0 = arith.constant 0 : i32
    %c0_i32_1 = arith.constant 0 : i32
    return %c0_i32, %c0_i32_0 : i32, i32
  }
  func.func @transform_19(%arg0: i32) -> (i32, i32) {
    %c0_i32 = arith.constant 0 : i32
    %c0_i32_0 = arith.constant 0 : i32
    %c0_i32_1 = arith.constant 0 : i32
    return %c0_i32, %c0_i32_0 : i32, i32
  }
  func.func @transform_20(%arg0: i32) -> (i32, i32) {
    %c0_i32 = arith.constant 0 : i32
    %c0_i32_0 = arith.constant 0 : i32
    return %arg0, %c0_i32 : i32, i32
  }
}

</mosaic_0001>

<llo_original>
// kernel: _lambda_.5
$region0: #{_lambda_.5}
  #allocation0 [shape = 'u32[]', space=smem, size = 0x4, offset = 0x4, fixed_abs, tag = 'smem constant byte address 0x4 - core index']
  #allocation1 [shape = 'u32[144,128]{1,0:T(1,128)}', space=vmem, size = 0x12000, scoped, tag = 'internal scratch']
  #allocation2 [shape = 'f32[16,1]{1,0:T(8,128)}', space=vmem, size = 0x2000, scoped, tag = 'scratch operand']
  #allocation3 [shape = 'f32[16,1]{1,0:T(8,128)}', space=vmem, size = 0x2000, scoped, tag = 'scratch operand']
  #allocation4 [shape = 'f32[16,1]{1,0:T(8,128)}', space=vmem, size = 0x2000, scoped, tag = 'scratch operand']
  %s0 = inlined_call_operand.vmem [shape: f32[16,32], index: 0, kind: input, shape index: {}]
  %s1 = inlined_call_operand.vmem [shape: s32[16,1], index: 1, kind: input, shape index: {}]
  %s2 = inlined_call_operand.vmem [shape: bf16[32,64], index: 2, kind: input, shape index: {}]
  %s3 = inlined_call_operand.vmem [shape: f32[1,64], index: 3, kind: input, shape index: {}]
  %s4 = inlined_call_operand.vmem [shape: f32[16,1], index: 4, kind: output, shape index: {}]
  %s5 = sld [smem:[#allocation0]]
  $region34: #{_lambda_.5} parent=0
    _
  %s7 = ssub.s32 1, %s5
  %s8 = scalar_select 0, %s7, %s5
  // Predicated region
  $region2: #{_lambda_.5} parent=0 // pred_check
    _
  $region3: #{_lambda_.5} parent=0 // pred_check_branch
    %10 = sbr.rel (0) target = $region5
  $region4: #{_lambda_.5} parent=0 // pred_region
    _
  $region5: #{_lambda_.5} parent=0 // pred_fallthru
    _
  // Predicated region
  $region6: #{_lambda_.5} parent=0 // pred_check
    _
  $region7: #{_lambda_.5} parent=0 // pred_check_branch
    %12 = sbr.rel (0) target = $region9
  $region8: #{_lambda_.5} parent=0 // pred_region
    _
  $region9: #{_lambda_.5} parent=0 // pred_fallthru
    _
  // Predicated region
  $region10: #{_lambda_.5} parent=0 // pred_check
    _
  $region11: #{_lambda_.5} parent=0 // pred_check_branch
    %14 = sbr.rel (0) target = $region13
  $region12: #{_lambda_.5} parent=0 // pred_region
    _
  $region13: #{_lambda_.5} parent=0 // pred_fallthru
    _
  // Predicated region
  $region14: #{_lambda_.5} parent=0 // pred_check
    _
  $region15: #{_lambda_.5} parent=0 // pred_check_branch
    %16 = sbr.rel (0) target = $region17
  $region16: #{_lambda_.5} parent=0 // pred_region
    _
  $region17: #{_lambda_.5} parent=0 // pred_fallthru
    _
  %p18 = scmp.eq.s32.totalorder 0, 0
  // Predicated region
  $region18: #{_lambda_.5} parent=0 // pred_check
    %p19 = pneg %p18
  $region19: #{_lambda_.5} parent=0 // pred_check_branch
    %21 = sbr.rel (%p19) target = $region21
  $region20: #{_lambda_.5} parent=0 // pred_region
    %vm22 = vcmask 7168
    %23 = vst.msk [vmem:[#allocation2] sm:$0xff] %vm22, -inf
    %24 = vst.msk [vmem:[#allocation2 + $0x8] sm:$0xff] %vm22, -inf
    %25 = vst.msk [vmem:[#allocation3] sm:$0xff] %vm22, 0.0
    %26 = vst.msk [vmem:[#allocation3 + $0x8] sm:$0xff] %vm22, 0.0
    %27 = vst.msk [vmem:[#allocation4] sm:$0xff] %vm22, 0.0
    %28 = vst.msk [vmem:[#allocation4 + $0x8] sm:$0xff] %vm22, 0.0
  $region21: #{_lambda_.5} parent=0 // pred_fallthru
    _
  %v29 = vld [vmem:[%s0] sm:$0xff]
  %v30 = vld [vmem:[%s0 + $0x8] sm:$0xff]
  %v31 = vpack.c.bf16 %v30, %v29
  %v32 = vld [vmem:[%s2] sm:$0xf]
  %v33 = vld [vmem:[%s2 + $0x4] sm:$0xf]
  %v34 = vld [vmem:[%s2 + $0x8] sm:$0xf]
  %v35 = vld [vmem:[%s2 + $0xc] sm:$0xf]
  %v36 = vld [vmem:[%s3] sm:$0x1]
  %v38 = vlaneseq
  %v39 = vshrl.u32 %v38, 7
  %v40 = vsub.s32 0, %v39
  %v41 = vrot.slane %v36, %v40
  %v47 = vunpack.c.l.b16 %v32
  %v48 = vunpack.c.l.b16 %v33
  %v49 = vunpack.c.l.b16 %v34
  %v50 = vunpack.c.l.b16 %v35
  %v51 = vpack.c.b16 %v48, %v47
  %v52 = vpack.c.b16 %v50, %v49
  %vm55 = vcmask 261120
  %v57 = vsel %vm55, %v31, 0
  %59 = vmatprep.subr.bf16.mxu0 0
  %60 = vmatpush1.bf16.msra.mxu0 %v51
  %61 = vmatprep.subr.bf16.mxu0 0
  %62 = vmatpush1.bf16.msra.mxu0 %v52
  %63 = vmatprep.subr.bf16.mxu0 0
  %64 = vmatpush1.bf16.msra.mxu0 0
  %65 = vmatprep.subr.bf16.mxu0 0
  %66 = vmatpush1.bf16.msra.mxu0 0
  %67 = vmatprep.subr.bf16.mxu0 0
  %68 = vmatpush1.bf16.msra.mxu0 0
  %69 = vmatprep.subr.bf16.mxu0 0
  %70 = vmatpush1.bf16.msra.mxu0 0
  %71 = vmatprep.subr.bf16.mxu0 0
  %72 = vmatpush1.bf16.msra.mxu0 0
  %73 = vmatprep.subr.bf16.mxu0 0
  %74 = vmatpush1.bf16.msra.mxu0 0
  %75 = vmatprep.subr.bf16.mxu0 0
  %76 = vmatpush1.bf16.msra.mxu0 0
  %77 = vmatprep.subr.bf16.mxu0 0
  %78 = vmatpush1.bf16.msra.mxu0 0
  %79 = vmatprep.subr.bf16.mxu0 0
  %80 = vmatpush1.bf16.msra.mxu0 0
  %81 = vmatprep.subr.bf16.mxu0 0
  %82 = vmatpush1.bf16.msra.mxu0 0
  %83 = vmatprep.subr.bf16.mxu0 0
  %84 = vmatpush1.bf16.msra.mxu0 0
  %85 = vmatprep.subr.bf16.mxu0 0
  %86 = vmatpush1.bf16.msra.mxu0 0
  %87 = vmatprep.subr.bf16.mxu0 0
  %88 = vmatpush1.bf16.msra.mxu0 0
  %89 = vmatprep.subr.bf16.mxu0 0
  %90 = vmatpush1.bf16.msra.mxu0 0
  %91 = vmatprep.mubr.bf16.mxu0 0
  %92 = vmatmul.mubr.bf16.gmra.mrb[0].mxu0 %v57
  %v93 = vpop.f32.mrb[0].mxu0
  %v94 = vadd.f32 %v41, %v93
  %v95 = vpop.f32.mrb[0].mxu0
  %v96 = vpop.f32.mrb[0].mxu0
  %v97 = vadd.f32 %v41, %v96
  %v98 = vpop.f32.mrb[0].mxu0
  %99 = vdwg.mxu0
  %v100 = vlaneseq
  %v101 = vand.u32 %v100, 127
  %s102 = smul.u32 0, 64
  %v103 = vstv %s102
  %v104 = vadd.s32 %v101, %v103
  %vm105 = vcmp.lt.s32.totalorder %v104, 64
  %v106 = vsel %vm105, %v94, -inf
  %v107 = vsel %vm105, %v97, -inf
  %v108 = vld [vmem:[%s1] sm:$0xff]
  %v109 = vld [vmem:[%s1 + $0x8] sm:$0xff]
  %110 = vset.pattern.permute.xlu0 0
  %111 = vperm.xlu0 %110, %v108
  %v112 = vpop.permute.xlu0 %111
  %113 = vset.pattern.permute.xlu0 0
  %114 = vperm.xlu0 %113, %v109
  %v115 = vpop.permute.xlu0 %114
  %vm116 = vcmp.eq.s32.totalorder %v104, %v112
  %vm117 = vcmp.eq.s32.totalorder %v104, %v115
  %v118 = vld [vmem:[#allocation4] sm:$0xff]
  %v119 = vld [vmem:[#allocation4 + $0x8] sm:$0xff]
  %v120 = vsel %vm116, %v106, 0.0
  %v121 = vsel %vm117, %v107, 0.0
  %vm122 = vcmask 523264
  %v123 = vsel %vm122, %v120, 0.0
  %124 = vadd.xlane.f32.xlu0 %v123
  %v125 = vpop.xlane.xlu0 %124
  %v126 = vsel %vm122, %v121, 0.0
  %127 = vadd.xlane.f32.xlu0 %v126
  %v128 = vpop.xlane.xlu0 %127
  %v129 = vadd.f32 %v118, %v125
  %v130 = vadd.f32 %v119, %v128
  %vm131 = vcmask 7168
  %132 = vst.msk [vmem:[#allocation4] sm:$0xff] %vm131, %v129
  %133 = vst.msk [vmem:[#allocation4 + $0x8] sm:$0xff] %vm131, %v130
  %v134 = vld [vmem:[#allocation2] sm:$0xff]
  %v135 = vld [vmem:[#allocation2 + $0x8] sm:$0xff]
  %v136 = vsel %vm122, %v106, -inf
  %137 = vmax.xlane.f32.xlu0 %v136
  %v138 = vpop.xlane.xlu0 %137
  %v139 = vsel %vm122, %v107, -inf
  %140 = vmax.xlane.f32.xlu0 %v139
  %v141 = vpop.xlane.xlu0 %140
  %v142 = vmax.f32 %v134, %v138
  %v143 = vmax.f32 %v135, %v141
  %v144 = vld [vmem:[#allocation3] sm:$0xff]
  %v145 = vld [vmem:[#allocation3 + $0x8] sm:$0xff]
  %v146 = vsub.f32 %v134, %v142
  %v147 = vsub.f32 %v135, %v143
  %v148 = vmul.f32 %v146, 1.442695
  %v149 = vpow.pop %v148
  %v150 = vmul.f32 %v147, 1.442695
  %v151 = vpow.pop %v150
  %v152 = vmul.f32 %v144, %v149
  %v153 = vmul.f32 %v145, %v151
  %155 = vset.pattern.permute.xlu0 0
  %156 = vperm.xlu0 %155, %v142
  %v157 = vpop.permute.xlu0 %156
  %160 = vset.pattern.permute.xlu0 0
  %161 = vperm.xlu0 %160, %v143
  %v162 = vpop.permute.xlu0 %161
  %v164 = vsub.f32 %v106, %v157
  %v165 = vsub.f32 %v107, %v162
  %v166 = vmul.f32 %v164, 1.442695
  %v167 = vpow.pop %v166
  %v168 = vmul.f32 %v165, 1.442695
  %v169 = vpow.pop %v168
  %v170 = vsel %vm122, %v167, 0.0
  %171 = vadd.xlane.f32.xlu0 %v170
  %v172 = vpop.xlane.xlu0 %171
  %v173 = vsel %vm122, %v169, 0.0
  %174 = vadd.xlane.f32.xlu0 %v173
  %v175 = vpop.xlane.xlu0 %174
  %v176 = vadd.f32 %v152, %v172
  %v177 = vadd.f32 %v153, %v175
  %178 = vst.msk [vmem:[#allocation3] sm:$0xff] %vm131, %v176
  %179 = vst.msk [vmem:[#allocation3 + $0x8] sm:$0xff] %vm131, %v177
  %180 = vst.msk [vmem:[#allocation2] sm:$0xff] %vm131, %v142
  %181 = vst.msk [vmem:[#allocation2 + $0x8] sm:$0xff] %vm131, %v143
  // Predicated region
  $region22: #{_lambda_.5} parent=0 // pred_check
    %p182 = pneg %p18
  $region23: #{_lambda_.5} parent=0 // pred_check_branch
    %184 = sbr.rel (%p182) target = $region25
  $region24: #{_lambda_.5} parent=0 // pred_region
    %v185 = vld [vmem:[#allocation2] sm:$0xff]
    %v186 = vld [vmem:[#allocation2 + $0x8] sm:$0xff]
    %v187 = vld [vmem:[#allocation3] sm:$0xff]
    %v188 = vld [vmem:[#allocation3 + $0x8] sm:$0xff]
    %v189 = vlog2.pop %v187
    %v190 = vmul.f32 %v189, 0.6931472
    %v191 = vlog2.pop %v188
    %v192 = vmul.f32 %v191, 0.6931472
    %v193 = vadd.f32 %v185, %v190
    %v194 = vadd.f32 %v186, %v192
    %v195 = vld [vmem:[#allocation4] sm:$0xff]
    %v196 = vld [vmem:[#allocation4 + $0x8] sm:$0xff]
    %v197 = vsub.f32 %v193, %v195
    %v198 = vsub.f32 %v194, %v196
    %199 = vst.msk [vmem:[%s4] sm:$0xff] %vm131, %v197
    %200 = vst.msk [vmem:[%s4 + $0x8] sm:$0xff] %vm131, %v198
  $region25: #{_lambda_.5} parent=0 // pred_fallthru
    _
  // Predicated region
  $region26: #{_lambda_.5} parent=0 // pred_check
    _
  $region27: #{_lambda_.5} parent=0 // pred_check_branch
    %202 = sbr.rel (0) target = $region29
  $region28: #{_lambda_.5} parent=0 // pred_region
    _
  $region29: #{_lambda_.5} parent=0 // pred_fallthru
    _
  // Predicated region
  $region30: #{_lambda_.5} parent=0 // pred_check
    _
  $region31: #{_lambda_.5} parent=0 // pred_check_branch
    %204 = sbr.rel (0) target = $region33
  $region32: #{_lambda_.5} parent=0 // pred_region
    _
  $region33: #{_lambda_.5} parent=0 // pred_fallthru
    _

// kernel: _lambda_.3
$region0: #{_lambda_.3}
  #allocation0 [shape = 'u32[]', space=smem, size = 0x4, offset = 0x4, fixed_abs, tag = 'smem constant byte address 0x4 - core index']
  #allocation1 [shape = 'u32[144,128]{1,0:T(1,128)}', space=vmem, size = 0x12000, scoped, tag = 'internal scratch']
  %s0 = inlined_call_operand.vmem [shape: f32[16,32], index: 0, kind: input, shape index: {}]
  %s1 = inlined_call_operand.vmem [shape: f32[16,1], index: 1, kind: input, shape index: {}]
  %s2 = inlined_call_operand.vmem [shape: f32[1,16], index: 2, kind: input, shape index: {}]
  %s3 = inlined_call_operand.vmem [shape: f32[16,1], index: 3, kind: input, shape index: {}]
  %s4 = inlined_call_operand.vmem [shape: f32[1,16], index: 4, kind: input, shape index: {}]
  %s5 = inlined_call_operand.vmem [shape: f32[16,32], index: 5, kind: input, shape index: {}]
  %s6 = inlined_call_operand.vmem [shape: f32[16,32], index: 6, kind: input, shape index: {}]
  %s7 = inlined_call_operand.vmem [shape: bf16[32,32], index: 7, kind: input, shape index: {}]
  %s8 = inlined_call_operand.vmem [shape: f32[1,32], index: 8, kind: input, shape index: {}]
  %s9 = inlined_call_operand.vmem [shape: f32[1,32], index: 9, kind: input, shape index: {}]
  %s10 = inlined_call_operand.vmem [shape: bf16[32,128], index: 10, kind: input, shape index: {}]
  %s11 = inlined_call_operand.vmem [shape: f32[1,128], index: 11, kind: input, shape index: {}]
  %s12 = inlined_call_operand.vmem [shape: bf16[4,8,32], index: 12, kind: input, shape index: {}]
  %s13 = inlined_call_operand.vmem [shape: f32[1,32], index: 13, kind: input, shape index: {}]
  %s14 = inlined_call_operand.vmem [shape: f32[1,32], index: 14, kind: input, shape index: {}]
  %s15 = inlined_call_operand.vmem [shape: f32[1,32], index: 15, kind: input, shape index: {}]
  %s16 = inlined_call_operand.vmem [shape: bf16[32,128], index: 16, kind: input, shape index: {}]
  %s17 = inlined_call_operand.vmem [shape: f32[1,128], index: 17, kind: input, shape index: {}]
  %s18 = inlined_call_operand.vmem [shape: bf16[128,32], index: 18, kind: input, shape index: {}]
  %s19 = inlined_call_operand.vmem [shape: f32[1,32], index: 19, kind: input, shape index: {}]
  %s20 = inlined_call_operand.vmem [shape: f32[16,32], index: 20, kind: output, shape index: {}]
  %s21 = sld [smem:[#allocation0]]
  $region90: #{_lambda_.3} parent=0
    _
  %s23 = ssub.s32 1, %s21
  %s24 = scalar_select 0, %s23, %s21
  // Predicated region
  $region2: #{_lambda_.3} parent=0 // pred_check
    _
  $region3: #{_lambda_.3} parent=0 // pred_check_branch
    %26 = sbr.rel (0) target = $region5
  $region4: #{_lambda_.3} parent=0 // pred_region
    _
  $region5: #{_lambda_.3} parent=0 // pred_fallthru
    _
  // Predicated region
  $region6: #{_lambda_.3} parent=0 // pred_check
    _
  $region7: #{_lambda_.3} parent=0 // pred_check_branch
    %28 = sbr.rel (0) target = $region9
  $region8: #{_lambda_.3} parent=0 // pred_region
    _
  $region9: #{_lambda_.3} parent=0 // pred_fallthru
    _
  // Predicated region
  $region10: #{_lambda_.3} parent=0 // pred_check
    _
  $region11: #{_lambda_.3} parent=0 // pred_check_branch
    %30 = sbr.rel (0) target = $region13
  $region12: #{_lambda_.3} parent=0 // pred_region
    _
  $region13: #{_lambda_.3} parent=0 // pred_fallthru
    _
  // Predicated region
  $region14: #{_lambda_.3} parent=0 // pred_check
    _
  $region15: #{_lambda_.3} parent=0 // pred_check_branch
    %32 = sbr.rel (0) target = $region17
  $region16: #{_lambda_.3} parent=0 // pred_region
    _
  $region17: #{_lambda_.3} parent=0 // pred_fallthru
    _
  // Predicated region
  $region18: #{_lambda_.3} parent=0 // pred_check
    _
  $region19: #{_lambda_.3} parent=0 // pred_check_branch
    %34 = sbr.rel (0) target = $region21
  $region20: #{_lambda_.3} parent=0 // pred_region
    _
  $region21: #{_lambda_.3} parent=0 // pred_fallthru
    _
  // Predicated region
  $region22: #{_lambda_.3} parent=0 // pred_check
    _
  $region23: #{_lambda_.3} parent=0 // pred_check_branch
    %36 = sbr.rel (0) target = $region25
  $region24: #{_lambda_.3} parent=0 // pred_region
    _
  $region25: #{_lambda_.3} parent=0 // pred_fallthru
    _
  // Predicated region
  $region26: #{_lambda_.3} parent=0 // pred_check
    _
  $region27: #{_lambda_.3} parent=0 // pred_check_branch
    %38 = sbr.rel (0) target = $region29
  $region28: #{_lambda_.3} parent=0 // pred_region
    _
  $region29: #{_lambda_.3} parent=0 // pred_fallthru
    _
  // Predicated region
  $region30: #{_lambda_.3} parent=0 // pred_check
    _
  $region31: #{_lambda_.3} parent=0 // pred_check_branch
    %40 = sbr.rel (0) target = $region33
  $region32: #{_lambda_.3} parent=0 // pred_region
    _
  $region33: #{_lambda_.3} parent=0 // pred_fallthru
    _
  // Predicated region
  $region34: #{_lambda_.3} parent=0 // pred_check
    _
  $region35: #{_lambda_.3} parent=0 // pred_check_branch
    %42 = sbr.rel (0) target = $region37
  $region36: #{_lambda_.3} parent=0 // pred_region
    _
  $region37: #{_lambda_.3} parent=0 // pred_fallthru
    _
  // Predicated region
  $region38: #{_lambda_.3} parent=0 // pred_check
    _
  $region39: #{_lambda_.3} parent=0 // pred_check_branch
    %44 = sbr.rel (0) target = $region41
  $region40: #{_lambda_.3} parent=0 // pred_region
    _
  $region41: #{_lambda_.3} parent=0 // pred_fallthru
    _
  // Predicated region
  $region42: #{_lambda_.3} parent=0 // pred_check
    _
  $region43: #{_lambda_.3} parent=0 // pred_check_branch
    %46 = sbr.rel (0) target = $region45
  $region44: #{_lambda_.3} parent=0 // pred_region
    _
  $region45: #{_lambda_.3} parent=0 // pred_fallthru
    _
  // Predicated region
  $region46: #{_lambda_.3} parent=0 // pred_check
    _
  $region47: #{_lambda_.3} parent=0 // pred_check_branch
    %48 = sbr.rel (0) target = $region49
  $region48: #{_lambda_.3} parent=0 // pred_region
    _
  $region49: #{_lambda_.3} parent=0 // pred_fallthru
    _
  // Predicated region
  $region50: #{_lambda_.3} parent=0 // pred_check
    _
  $region51: #{_lambda_.3} parent=0 // pred_check_branch
    %50 = sbr.rel (0) target = $region53
  $region52: #{_lambda_.3} parent=0 // pred_region
    _
  $region53: #{_lambda_.3} parent=0 // pred_fallthru
    _
  // Predicated region
  $region54: #{_lambda_.3} parent=0 // pred_check
    _
  $region55: #{_lambda_.3} parent=0 // pred_check_branch
    %52 = sbr.rel (0) target = $region57
  $region56: #{_lambda_.3} parent=0 // pred_region
    _
  $region57: #{_lambda_.3} parent=0 // pred_fallthru
    _
  // Predicated region
  $region58: #{_lambda_.3} parent=0 // pred_check
    _
  $region59: #{_lambda_.3} parent=0 // pred_check_branch
    %54 = sbr.rel (0) target = $region61
  $region60: #{_lambda_.3} parent=0 // pred_region
    _
  $region61: #{_lambda_.3} parent=0 // pred_fallthru
    _
  // Predicated region
  $region62: #{_lambda_.3} parent=0 // pred_check
    _
  $region63: #{_lambda_.3} parent=0 // pred_check_branch
    %56 = sbr.rel (0) target = $region65
  $region64: #{_lambda_.3} parent=0 // pred_region
    _
  $region65: #{_lambda_.3} parent=0 // pred_fallthru
    _
  // Predicated region
  $region66: #{_lambda_.3} parent=0 // pred_check
    _
  $region67: #{_lambda_.3} parent=0 // pred_check_branch
    %58 = sbr.rel (0) target = $region69
  $region68: #{_lambda_.3} parent=0 // pred_region
    _
  $region69: #{_lambda_.3} parent=0 // pred_fallthru
    _
  // Predicated region
  $region70: #{_lambda_.3} parent=0 // pred_check
    _
  $region71: #{_lambda_.3} parent=0 // pred_check_branch
    %60 = sbr.rel (0) target = $region73
  $region72: #{_lambda_.3} parent=0 // pred_region
    _
  $region73: #{_lambda_.3} parent=0 // pred_fallthru
    _
  // Predicated region
  $region74: #{_lambda_.3} parent=0 // pred_check
    _
  $region75: #{_lambda_.3} parent=0 // pred_check_branch
    %62 = sbr.rel (0) target = $region77
  $region76: #{_lambda_.3} parent=0 // pred_region
    _
  $region77: #{_lambda_.3} parent=0 // pred_fallthru
    _
  // Predicated region
  $region78: #{_lambda_.3} parent=0 // pred_check
    _
  $region79: #{_lambda_.3} parent=0 // pred_check_branch
    %64 = sbr.rel (0) target = $region81
  $region80: #{_lambda_.3} parent=0 // pred_region
    _
  $region81: #{_lambda_.3} parent=0 // pred_fallthru
    _
  %v66 = vld [vmem:[%s0] sm:$0xff]
  %v67 = vld [vmem:[%s0 + $0x8] sm:$0xff]
  %vm68 = vcmask 261120
  %v69 = vsel %vm68, %v66, 0.0
  %70 = vadd.xlane.f32.xlu0 %v69
  %v71 = vpop.xlane.xlu0 %70
  %v72 = vsel %vm68, %v67, 0.0
  %73 = vadd.xlane.f32.xlu0 %v72
  %v74 = vpop.xlane.xlu0 %73
  %v75 = vrcp.pop 32.0
  %v76 = vmul.f32 %v71, %v75
  %v77 = vmul.f32 %v74, %v75
  %v78 = vsub.f32 %v66, %v76
  %v79 = vsub.f32 %v67, %v77
  %v80 = vmul.f32 %v78, %v78
  %v81 = vmul.f32 %v79, %v79
  %v82 = vsel %vm68, %v80, 0.0
  %83 = vadd.xlane.f32.xlu0 %v82
  %v84 = vpop.xlane.xlu0 %83
  %v85 = vsel %vm68, %v81, 0.0
  %86 = vadd.xlane.f32.xlu0 %v85
  %v87 = vpop.xlane.xlu0 %86
  %v88 = vmul.f32 %v84, %v75
  %v89 = vmul.f32 %v87, %v75
  %v90 = vadd.f32 %v88, 1e-06
  %v91 = vadd.f32 %v89, 1e-06
  %v92 = vrsqrt.pop %v90
  %v93 = vrsqrt.pop %v91
  %v94 = vmul.f32 %v78, %v92
  %v95 = vmul.f32 %v79, %v93
  %v96 = vld [vmem:[%s8] sm:$0x1]
  %v98 = vlaneseq
  %v99 = vshrl.u32 %v98, 7
  %v100 = vsub.s32 0, %v99
  %v101 = vrot.slane %v96, %v100
  %v103 = vmul.f32 %v94, %v101
  %v104 = vmul.f32 %v95, %v101
  %v105 = vld [vmem:[%s9] sm:$0x1]
  %v107 = vlaneseq
  %v108 = vshrl.u32 %v107, 7
  %v109 = vsub.s32 0, %v108
  %v110 = vrot.slane %v105, %v109
  %v112 = vadd.f32 %v103, %v110
  %v113 = vadd.f32 %v104, %v110
  %v114 = vpack.c.bf16 %v113, %v112
  %v115 = vld [vmem:[%s10] sm:$0xf]
  %v116 = vld [vmem:[%s10 + $0x4] sm:$0xf]
  %v117 = vld [vmem:[%s10 + $0x8] sm:$0xf]
  %v118 = vld [vmem:[%s10 + $0xc] sm:$0xf]
  %v119 = vld [vmem:[%s11] sm:$0x1]
  %v121 = vlaneseq
  %v122 = vshrl.u32 %v121, 7
  %v123 = vsub.s32 0, %v122
  %v124 = vrot.slane %v119, %v123
  %v130 = vunpack.c.l.b16 %v115
  %v131 = vunpack.c.l.b16 %v116
  %v132 = vunpack.c.l.b16 %v117
  %v133 = vunpack.c.l.b16 %v118
  %v134 = vpack.c.b16 %v131, %v130
  %v135 = vpack.c.b16 %v133, %v132
  %v139 = vsel %vm68, %v114, 0
  %141 = vmatprep.subr.bf16.mxu0 0
  %142 = vmatpush1.bf16.msra.mxu0 %v134
  %143 = vmatprep.subr.bf16.mxu0 0
  %144 = vmatpush1.bf16.msra.mxu0 %v135
  %145 = vmatprep.subr.bf16.mxu0 0
  %146 = vmatpush1.bf16.msra.mxu0 0
  %147 = vmatprep.subr.bf16.mxu0 0
  %148 = vmatpush1.bf16.msra.mxu0 0
  %149 = vmatprep.subr.bf16.mxu0 0
  %150 = vmatpush1.bf16.msra.mxu0 0
  %151 = vmatprep.subr.bf16.mxu0 0
  %152 = vmatpush1.bf16.msra.mxu0 0
  %153 = vmatprep.subr.bf16.mxu0 0
  %154 = vmatpush1.bf16.msra.mxu0 0
  %155 = vmatprep.subr.bf16.mxu0 0
  %156 = vmatpush1.bf16.msra.mxu0 0
  %157 = vmatprep.subr.bf16.mxu0 0
  %158 = vmatpush1.bf16.msra.mxu0 0
  %159 = vmatprep.subr.bf16.mxu0 0
  %160 = vmatpush1.bf16.msra.mxu0 0
  %161 = vmatprep.subr.bf16.mxu0 0
  %162 = vmatpush1.bf16.msra.mxu0 0
  %163 = vmatprep.subr.bf16.mxu0 0
  %164 = vmatpush1.bf16.msra.mxu0 0
  %165 = vmatprep.subr.bf16.mxu0 0
  %166 = vmatpush1.bf16.msra.mxu0 0
  %167 = vmatprep.subr.bf16.mxu0 0
  %168 = vmatpush1.bf16.msra.mxu0 0
  %169 = vmatprep.subr.bf16.mxu0 0
  %170 = vmatpush1.bf16.msra.mxu0 0
  %171 = vmatprep.subr.bf16.mxu0 0
  %172 = vmatpush1.bf16.msra.mxu0 0
  %173 = vmatprep.mubr.bf16.mxu0 0
  %174 = vmatmul.mubr.bf16.gmra.mrb[0].mxu0 %v139
  %v175 = vpop.f32.mrb[0].mxu0
  %v176 = vadd.f32 %v124, %v175
  %v177 = vpop.f32.mrb[0].mxu0
  %v178 = vpop.f32.mrb[0].mxu0
  %v179 = vadd.f32 %v124, %v178
  %v180 = vpop.f32.mrb[0].mxu0
  %181 = vdwg.mxu0
  %v182 = vld [vmem:[%s5] sm:$0xff]
  %v183 = vld [vmem:[%s5 + $0x8] sm:$0xff]
  %v184 = vld [vmem:[%s6] sm:$0xff]
  %v185 = vld [vmem:[%s6 + $0x8] sm:$0xff]
  %v186 = vld [vmem:[%s7] sm:$0xf]
  %v187 = vld [vmem:[%s7 + $0x4] sm:$0xf]
  %v188 = vld [vmem:[%s7 + $0x8] sm:$0xf]
  %v189 = vld [vmem:[%s7 + $0xc] sm:$0xf]
  %v190 = vmul.f32 %v176, %v184
  %v191 = vmul.f32 %v179, %v185
  %v192 = vpack.c.bf16 %v179, %v176
  %v197 = vunpack.c.l.b16 %v186
  %v198 = vunpack.c.l.b16 %v187
  %v199 = vunpack.c.l.b16 %v188
  %v200 = vunpack.c.l.b16 %v189
  %v201 = vpack.c.b16 %v198, %v197
  %v202 = vpack.c.b16 %v200, %v199
  %v206 = vsel %vm68, %v192, 0
  %208 = vmatprep.subr.bf16.mxu0 0
  %209 = vmatpush1.bf16.msra.mxu0 %v201
  %210 = vmatprep.subr.bf16.mxu0 0
  %211 = vmatpush1.bf16.msra.mxu0 %v202
  %212 = vmatprep.subr.bf16.mxu0 0
  %213 = vmatpush1.bf16.msra.mxu0 0
  %214 = vmatprep.subr.bf16.mxu0 0
  %215 = vmatpush1.bf16.msra.mxu0 0
  %216 = vmatprep.subr.bf16.mxu0 0
  %217 = vmatpush1.bf16.msra.mxu0 0
  %218 = vmatprep.subr.bf16.mxu0 0
  %219 = vmatpush1.bf16.msra.mxu0 0
  %220 = vmatprep.subr.bf16.mxu0 0
  %221 = vmatpush1.bf16.msra.mxu0 0
  %222 = vmatprep.subr.bf16.mxu0 0
  %223 = vmatpush1.bf16.msra.mxu0 0
  %224 = vmatprep.subr.bf16.mxu0 0
  %225 = vmatpush1.bf16.msra.mxu0 0
  %226 = vmatprep.subr.bf16.mxu0 0
  %227 = vmatpush1.bf16.msra.mxu0 0
  %228 = vmatprep.subr.bf16.mxu0 0
  %229 = vmatpush1.bf16.msra.mxu0 0
  %230 = vmatprep.subr.bf16.mxu0 0
  %231 = vmatpush1.bf16.msra.mxu0 0
  %232 = vmatprep.subr.bf16.mxu0 0
  %233 = vmatpush1.bf16.msra.mxu0 0
  %234 = vmatprep.subr.bf16.mxu0 0
  %235 = vmatpush1.bf16.msra.mxu0 0
  %236 = vmatprep.subr.bf16.mxu0 0
  %237 = vmatpush1.bf16.msra.mxu0 0
  %238 = vmatprep.subr.bf16.mxu0 0
  %239 = vmatpush1.bf16.msra.mxu0 0
  %240 = vmatprep.mubr.bf16.mxu0 0
  %241 = vmatmul.mubr.bf16.gmra.mrb[0].mxu0 %v206
  %v242 = vpop.f32.mrb[0].mxu0
  %v243 = vadd.f32 0.0, %v242
  %v244 = vpop.f32.mrb[0].mxu0
  %v245 = vpop.f32.mrb[0].mxu0
  %v246 = vadd.f32 0.0, %v245
  %v247 = vpop.f32.mrb[0].mxu0
  %248 = vdwg.mxu0
  %v249 = vmul.f32 %v243, %v182
  %v250 = vmul.f32 %v246, %v183
  %v251 = vadd.f32 %v190, %v249
  %v252 = vadd.f32 %v191, %v250
  %255 = vrot.lane.b32.xlu0 %v184, 32
  %v256 = vpop.permute.xlu0 %255
  %257 = vrot.lane.b32.xlu0 %v185, 32
  %v258 = vpop.permute.xlu0 %257
  %v261 = vmul.f32 %v176, %v256
  %v262 = vmul.f32 %v179, %v258
  %264 = vrot.lane.b32.xlu0 %v192, 96
  %v265 = vpop.permute.xlu0 %264
  %v267 = vsel %vm68, %v265, 0
  %269 = vmatprep.subr.bf16.mxu0 0
  %270 = vmatpush1.bf16.msra.mxu0 %v201
  %271 = vmatprep.subr.bf16.mxu0 0
  %272 = vmatpush1.bf16.msra.mxu0 %v202
  %273 = vmatprep.subr.bf16.mxu0 0
  %274 = vmatpush1.bf16.msra.mxu0 0
  %275 = vmatprep.subr.bf16.mxu0 0
  %276 = vmatpush1.bf16.msra.mxu0 0
  %277 = vmatprep.subr.bf16.mxu0 0
  %278 = vmatpush1.bf16.msra.mxu0 0
  %279 = vmatprep.subr.bf16.mxu0 0
  %280 = vmatpush1.bf16.msra.mxu0 0
  %281 = vmatprep.subr.bf16.mxu0 0
  %282 = vmatpush1.bf16.msra.mxu0 0
  %283 = vmatprep.subr.bf16.mxu0 0
  %284 = vmatpush1.bf16.msra.mxu0 0
  %285 = vmatprep.subr.bf16.mxu0 0
  %286 = vmatpush1.bf16.msra.mxu0 0
  %287 = vmatprep.subr.bf16.mxu0 0
  %288 = vmatpush1.bf16.msra.mxu0 0
  %289 = vmatprep.subr.bf16.mxu0 0
  %290 = vmatpush1.bf16.msra.mxu0 0
  %291 = vmatprep.subr.bf16.mxu0 0
  %292 = vmatpush1.bf16.msra.mxu0 0
  %293 = vmatprep.subr.bf16.mxu0 0
  %294 = vmatpush1.bf16.msra.mxu0 0
  %295 = vmatprep.subr.bf16.mxu0 0
  %296 = vmatpush1.bf16.msra.mxu0 0
  %297 = vmatprep.subr.bf16.mxu0 0
  %298 = vmatpush1.bf16.msra.mxu0 0
  %299 = vmatprep.subr.bf16.mxu0 0
  %300 = vmatpush1.bf16.msra.mxu0 0
  %301 = vmatprep.mubr.bf16.mxu0 0
  %302 = vmatmul.mubr.bf16.gmra.mrb[0].mxu0 %v267
  %v303 = vpop.f32.mrb[0].mxu0
  %v304 = vadd.f32 0.0, %v303
  %v305 = vpop.f32.mrb[0].mxu0
  %v306 = vpop.f32.mrb[0].mxu0
  %v307 = vadd.f32 0.0, %v306
  %v308 = vpop.f32.mrb[0].mxu0
  %309 = vdwg.mxu0
  %v310 = vmul.f32 %v304, %v182
  %v311 = vmul.f32 %v307, %v183
  %314 = vrot.lane.b32.xlu0 %v310, 32
  %v315 = vpop.permute.xlu0 %314
  %316 = vrot.lane.b32.xlu0 %v311, 32
  %v317 = vpop.permute.xlu0 %316
  %v320 = vadd.f32 %v261, %v315
  %v321 = vadd.f32 %v262, %v317
  %v322 = vmul.f32 %v320, 0.35355338
  %v323 = vmul.f32 %v321, 0.35355338
  %v324 = vpack.c.bf16 %v252, %v251
  %v325 = vpack.c.bf16 %v323, %v322
  %v326 = vld [vmem:[%s1] sm:$0xff]
  %v327 = vld [vmem:[%s1 + $0x8] sm:$0xff]
  %v328 = vld [vmem:[%s2] sm:$0x1]
  %330 = vset.pattern.permute.xlu0 0
  %331 = vperm.xlu0 %330, %v326
  %v332 = vpop.permute.xlu0 %331
  %335 = vset.pattern.permute.xlu0 0
  %336 = vperm.xlu0 %335, %v327
  %v337 = vpop.permute.xlu0 %336
  %v340 = vlaneseq
  %v341 = vshrl.u32 %v340, 7
  %v342 = vsub.s32 0, %v341
  %v343 = vrot.slane %v328, %v342
  %v345 = vsub.f32 %v332, %v343
  %v346 = vsub.f32 %v337, %v343
  %v347 = vld [vmem:[%s3] sm:$0xff]
  %v348 = vld [vmem:[%s3 + $0x8] sm:$0xff]
  %v349 = vld [vmem:[%s4] sm:$0x1]
  %351 = vset.pattern.permute.xlu0 0
  %352 = vperm.xlu0 %351, %v347
  %v353 = vpop.permute.xlu0 %352
  %356 = vset.pattern.permute.xlu0 0
  %357 = vperm.xlu0 %356, %v348
  %v358 = vpop.permute.xlu0 %357
  %v361 = vlaneseq
  %v362 = vshrl.u32 %v361, 7
  %v363 = vsub.s32 0, %v362
  %v364 = vrot.slane %v349, %v363
  %vm366 = vcmp.eq.f32.partialorder %v353, %v364
  %vm367 = vcmp.eq.f32.partialorder %v358, %v364
  %vm368 = vcmp.ge.f32.partialorder %v345, 0.0
  %vm369 = vcmp.ge.f32.partialorder %v346, 0.0
  %vm370 = vmand %vm366, %vm368
  %vm371 = vmand %vm367, %vm369
  %v372 = vmax.f32 %v345, 0.0
  %v373 = vmax.f32 %v346, 0.0
  %v374 = vmul.f32 %v372, -0.031748697
  %v375 = vmul.f32 %v373, -0.031748697
  %v376 = vmul.f32 %v374, 1.442695
  %v377 = vpow.pop %v376
  %v378 = vmul.f32 %v375, 1.442695
  %v379 = vpow.pop %v378
  %v380 = vsel %vm370, %v377, 0.0
  %v381 = vsel %vm371, %v379, 0.0
  %383 = vrot.lane.b32.xlu0 %v325, 96
  %v384 = vpop.permute.xlu0 %383
  %vm385 = vcmask 64512
  %v387 = vsel %vm385, %v324, 0
  %v390 = vsel %vm385, %v384, 0
  %392 = vmatprep.subr.bf16.mxu0 0
  %393 = vmatpush1.bf16.xpose.msra.mxu0 %v390
  %394 = vmatprep.subr.bf16.mxu0 0
  %395 = vmatpush1.bf16.xpose.msra.mxu0 0
  %396 = vmatprep.subr.bf16.mxu0 0
  %397 = vmatpush1.bf16.xpose.msra.mxu0 0
  %398 = vmatprep.subr.bf16.mxu0 0
  %399 = vmatpush1.bf16.xpose.msra.mxu0 0
  %400 = vmatprep.subr.bf16.mxu0 0
  %401 = vmatpush1.bf16.xpose.msra.mxu0 0
  %402 = vmatprep.subr.bf16.mxu0 0
  %403 = vmatpush1.bf16.xpose.msra.mxu0 0
  %404 = vmatprep.subr.bf16.mxu0 0
  %405 = vmatpush1.bf16.xpose.msra.mxu0 0
  %406 = vmatprep.subr.bf16.mxu0 0
  %407 = vmatpush1.bf16.xpose.msra.mxu0 0
  %408 = vmatprep.subr.bf16.mxu0 0
  %409 = vmatpush1.bf16.xpose.msra.mxu0 0
  %410 = vmatprep.subr.bf16.mxu0 0
  %411 = vmatpush1.bf16.xpose.msra.mxu0 0
  %412 = vmatprep.subr.bf16.mxu0 0
  %413 = vmatpush1.bf16.xpose.msra.mxu0 0
  %414 = vmatprep.subr.bf16.mxu0 0
  %415 = vmatpush1.bf16.xpose.msra.mxu0 0
  %416 = vmatprep.subr.bf16.mxu0 0
  %417 = vmatpush1.bf16.xpose.msra.mxu0 0
  %418 = vmatprep.subr.bf16.mxu0 0
  %419 = vmatpush1.bf16.xpose.msra.mxu0 0
  %420 = vmatprep.subr.bf16.mxu0 0
  %421 = vmatpush1.bf16.xpose.msra.mxu0 0
  %422 = vmatprep.subr.bf16.mxu0 0
  %423 = vmatpush1.bf16.xpose.msra.mxu0 0
  %424 = vmatprep.mubr.bf16.mxu0 0
  %425 = vmatmul.mubr.bf16.gmra.mrb[0].mxu0 %v387
  %v426 = vpop.f32.mrb[0].mxu0
  %v427 = vadd.f32 0.0, %v426
  %v428 = vpop.f32.mrb[0].mxu0
  %v429 = vpop.f32.mrb[0].mxu0
  %v430 = vadd.f32 0.0, %v429
  %v431 = vpop.f32.mrb[0].mxu0
  %432 = vdwg.mxu0
  %v433 = vmul.f32 %v427, %v380
  %v434 = vmul.f32 %v430, %v381
  %v435 = vpack.c.bf16 %v434, %v433
  %436 = vrot.lane.b32.xlu0 %v192, 64
  %v437 = vpop.permute.xlu0 %436
  %vm439 = vcmask 130048
  %v441 = vsel %vm439, %v435, 0
  %443 = vmatprep.subr.bf16.mxu0 0
  %444 = vmatpush1.bf16.msra.mxu0 %v437
  %445 = vmatprep.subr.bf16.mxu0 0
  %446 = vmatpush1.bf16.msra.mxu0 0
  %447 = vmatprep.subr.bf16.mxu0 0
  %448 = vmatpush1.bf16.msra.mxu0 0
  %449 = vmatprep.subr.bf16.mxu0 0
  %450 = vmatpush1.bf16.msra.mxu0 0
  %451 = vmatprep.subr.bf16.mxu0 0
  %452 = vmatpush1.bf16.msra.mxu0 0
  %453 = vmatprep.subr.bf16.mxu0 0
  %454 = vmatpush1.bf16.msra.mxu0 0
  %455 = vmatprep.subr.bf16.mxu0 0
  %456 = vmatpush1.bf16.msra.mxu0 0
  %457 = vmatprep.subr.bf16.mxu0 0
  %458 = vmatpush1.bf16.msra.mxu0 0
  %459 = vmatprep.subr.bf16.mxu0 0
  %460 = vmatpush1.bf16.msra.mxu0 0
  %461 = vmatprep.subr.bf16.mxu0 0
  %462 = vmatpush1.bf16.msra.mxu0 0
  %463 = vmatprep.subr.bf16.mxu0 0
  %464 = vmatpush1.bf16.msra.mxu0 0
  %465 = vmatprep.subr.bf16.mxu0 0
  %466 = vmatpush1.bf16.msra.mxu0 0
  %467 = vmatprep.subr.bf16.mxu0 0
  %468 = vmatpush1.bf16.msra.mxu0 0
  %469 = vmatprep.subr.bf16.mxu0 0
  %470 = vmatpush1.bf16.msra.mxu0 0
  %471 = vmatprep.subr.bf16.mxu0 0
  %472 = vmatpush1.bf16.msra.mxu0 0
  %473 = vmatprep.subr.bf16.mxu0 0
  %474 = vmatpush1.bf16.msra.mxu0 0
  %475 = vmatprep.mubr.bf16.mxu0 0
  %476 = vmatmul.mubr.bf16.gmra.mrb[0].mxu0 %v441
  %v477 = vpop.f32.mrb[0].mxu0
  %v478 = vadd.f32 0.0, %v477
  %v479 = vpop.f32.mrb[0].mxu0
  %v480 = vpop.f32.mrb[0].mxu0
  %v481 = vadd.f32 0.0, %v480
  %v482 = vpop.f32.mrb[0].mxu0
  %483 = vdwg.mxu0
  %v484 = vsel %vm385, %v478, 0.0
  %485 = vadd.xlane.f32.xlu0 %v484
  %v486 = vpop.xlane.xlu0 %485
  %v487 = vsel %vm385, %v481, 0.0
  %488 = vadd.xlane.f32.xlu0 %v487
  %v489 = vpop.xlane.xlu0 %488
  %v490 = vrcp.pop 8.0
  %v491 = vmul.f32 %v486, %v490
  %v492 = vmul.f32 %v489, %v490
  %v493 = vsub.f32 %v478, %v491
  %v494 = vsub.f32 %v481, %v492
  %v495 = vmul.f32 %v493, %v493
  %v496 = vmul.f32 %v494, %v494
  %v497 = vsel %vm385, %v495, 0.0
  %498 = vadd.xlane.f32.xlu0 %v497
  %v499 = vpop.xlane.xlu0 %498
  %v500 = vsel %vm385, %v496, 0.0
  %501 = vadd.xlane.f32.xlu0 %v500
  %v502 = vpop.xlane.xlu0 %501
  %v503 = vmul.f32 %v499, %v490
  %v504 = vmul.f32 %v502, %v490
  %v505 = vadd.f32 %v503, 1e-06
  %v506 = vadd.f32 %v504, 1e-06
  %v507 = vrsqrt.pop %v505
  %v508 = vrsqrt.pop %v506
  %v509 = vmul.f32 %v493, %v507
  %v510 = vmul.f32 %v494, %v508
  %v511 = vxor.u32 %v176, 2147483648
  %v512 = vxor.u32 %v179, 2147483648
  %v513 = vmul.f32 %v511, 1.442695
  %v514 = vpow.pop %v513
  %v515 = vmul.f32 %v512, 1.442695
  %v516 = vpow.pop %v515
  %v517 = vadd.f32 %v514, 1.0
  %v518 = vadd.f32 %v516, 1.0
  %v519 = vrcp.pop %v517
  %v520 = vmul.f32 1.0, %v519
  %v521 = vrcp.pop %v518
  %v522 = vmul.f32 1.0, %v521
  %v523 = vmul.f32 %v176, %v520
  %v524 = vmul.f32 %v179, %v522
  %527 = vrot.lane.b32.xlu0 %v523, 32
  %v528 = vpop.permute.xlu0 %527
  %529 = vrot.lane.b32.xlu0 %v524, 32
  %v530 = vpop.permute.xlu0 %529
  %v533 = vmul.f32 %v509, %v528
  %v534 = vmul.f32 %v510, %v530
  %v535 = vpack.c.bf16 %v534, %v533
  %v536 = vld [vmem:[%s12] sm:$0xf]
  %v537 = vmul.f32 %v372, -0.012479112
  %v538 = vmul.f32 %v373, -0.012479112
  %v539 = vmul.f32 %v537, 1.442695
  %v540 = vpow.pop %v539
  %v541 = vmul.f32 %v538, 1.442695
  %v542 = vpow.pop %v541
  %v543 = vsel %vm370, %v540, 0.0
  %v544 = vsel %vm371, %v542, 0.0
  %546 = vrot.lane.b32.xlu0 %v324, 120
  %v547 = vpop.permute.xlu0 %546
  %548 = vrot.lane.b32.xlu0 %v325, 88
  %v549 = vpop.permute.xlu0 %548
  %v551 = vsel %vm385, %v547, 0
  %v554 = vsel %vm385, %v549, 0
  %556 = vmatprep.subr.bf16.mxu0 0
  %557 = vmatpush1.bf16.xpose.msra.mxu0 %v554
  %558 = vmatprep.subr.bf16.mxu0 0
  %559 = vmatpush1.bf16.xpose.msra.mxu0 0
  %560 = vmatprep.subr.bf16.mxu0 0
  %561 = vmatpush1.bf16.xpose.msra.mxu0 0
  %562 = vmatprep.subr.bf16.mxu0 0
  %563 = vmatpush1.bf16.xpose.msra.mxu0 0
  %564 = vmatprep.subr.bf16.mxu0 0
  %565 = vmatpush1.bf16.xpose.msra.mxu0 0
  %566 = vmatprep.subr.bf16.mxu0 0
  %567 = vmatpush1.bf16.xpose.msra.mxu0 0
  %568 = vmatprep.subr.bf16.mxu0 0
  %569 = vmatpush1.bf16.xpose.msra.mxu0 0
  %570 = vmatprep.subr.bf16.mxu0 0
  %571 = vmatpush1.bf16.xpose.msra.mxu0 0
  %572 = vmatprep.subr.bf16.mxu0 0
  %573 = vmatpush1.bf16.xpose.msra.mxu0 0
  %574 = vmatprep.subr.bf16.mxu0 0
  %575 = vmatpush1.bf16.xpose.msra.mxu0 0
  %576 = vmatprep.subr.bf16.mxu0 0
  %577 = vmatpush1.bf16.xpose.msra.mxu0 0
  %578 = vmatprep.subr.bf16.mxu0 0
  %579 = vmatpush1.bf16.xpose.msra.mxu0 0
  %580 = vmatprep.subr.bf16.mxu0 0
  %581 = vmatpush1.bf16.xpose.msra.mxu0 0
  %582 = vmatprep.subr.bf16.mxu0 0
  %583 = vmatpush1.bf16.xpose.msra.mxu0 0
  %584 = vmatprep.subr.bf16.mxu0 0
  %585 = vmatpush1.bf16.xpose.msra.mxu0 0
  %586 = vmatprep.subr.bf16.mxu0 0
  %587 = vmatpush1.bf16.xpose.msra.mxu0 0
  %588 = vmatprep.mubr.bf16.mxu0 0
  %589 = vmatmul.mubr.bf16.gmra.mrb[0].mxu0 %v551
  %v590 = vpop.f32.mrb[0].mxu0
  %v591 = vadd.f32 0.0, %v590
  %v592 = vpop.f32.mrb[0].mxu0
  %v593 = vpop.f32.mrb[0].mxu0
  %v594 = vadd.f32 0.0, %v593
  %v595 = vpop.f32.mrb[0].mxu0
  %596 = vdwg.mxu0
  %v597 = vmul.f32 %v591, %v543
  %v598 = vmul.f32 %v594, %v544
  %v599 = vpack.c.bf16 %v598, %v597
  %600 = vrot.lane.b32.xlu0 %v192, 56
  %v601 = vpop.permute.xlu0 %600
  %v604 = vsel %vm439, %v599, 0
  %606 = vmatprep.subr.bf16.mxu0 0
  %607 = vmatpush1.bf16.msra.mxu0 %v601
  %608 = vmatprep.subr.bf16.mxu0 0
  %609 = vmatpush1.bf16.msra.mxu0 0
  %610 = vmatprep.subr.bf16.mxu0 0
  %611 = vmatpush1.bf16.msra.mxu0 0
  %612 = vmatprep.subr.bf16.mxu0 0
  %613 = vmatpush1.bf16.msra.mxu0 0
  %614 = vmatprep.subr.bf16.mxu0 0
  %615 = vmatpush1.bf16.msra.mxu0 0
  %616 = vmatprep.subr.bf16.mxu0 0
  %617 = vmatpush1.bf16.msra.mxu0 0
  %618 = vmatprep.subr.bf16.mxu0 0
  %619 = vmatpush1.bf16.msra.mxu0 0
  %620 = vmatprep.subr.bf16.mxu0 0
  %621 = vmatpush1.bf16.msra.mxu0 0
  %622 = vmatprep.subr.bf16.mxu0 0
  %623 = vmatpush1.bf16.msra.mxu0 0
  %624 = vmatprep.subr.bf16.mxu0 0
  %625 = vmatpush1.bf16.msra.mxu0 0
  %626 = vmatprep.subr.bf16.mxu0 0
  %627 = vmatpush1.bf16.msra.mxu0 0
  %628 = vmatprep.subr.bf16.mxu0 0
  %629 = vmatpush1.bf16.msra.mxu0 0
  %630 = vmatprep.subr.bf16.mxu0 0
  %631 = vmatpush1.bf16.msra.mxu0 0
  %632 = vmatprep.subr.bf16.mxu0 0
  %633 = vmatpush1.bf16.msra.mxu0 0
  %634 = vmatprep.subr.bf16.mxu0 0
  %635 = vmatpush1.bf16.msra.mxu0 0
  %636 = vmatprep.subr.bf16.mxu0 0
  %637 = vmatpush1.bf16.msra.mxu0 0
  %638 = vmatprep.mubr.bf16.mxu0 0
  %639 = vmatmul.mubr.bf16.gmra.mrb[0].mxu0 %v604
  %v640 = vpop.f32.mrb[0].mxu0
  %v641 = vadd.f32 0.0, %v640
  %v642 = vpop.f32.mrb[0].mxu0
  %v643 = vpop.f32.mrb[0].mxu0
  %v644 = vadd.f32 0.0, %v643
  %v645 = vpop.f32.mrb[0].mxu0
  %646 = vdwg.mxu0
  %v647 = vsel %vm385, %v641, 0.0
  %648 = vadd.xlane.f32.xlu0 %v647
  %v649 = vpop.xlane.xlu0 %648
  %v650 = vsel %vm385, %v644, 0.0
  %651 = vadd.xlane.f32.xlu0 %v650
  %v652 = vpop.xlane.xlu0 %651
  %v653 = vmul.f32 %v649, %v490
  %v654 = vmul.f32 %v652, %v490
  %v655 = vsub.f32 %v641, %v653
  %v656 = vsub.f32 %v644, %v654
  %v657 = vmul.f32 %v655, %v655
  %v658 = vmul.f32 %v656, %v656
  %v659 = vsel %vm385, %v657, 0.0
  %660 = vadd.xlane.f32.xlu0 %v659
  %v661 = vpop.xlane.xlu0 %660
  %v662 = vsel %vm385, %v658, 0.0
  %663 = vadd.xlane.f32.xlu0 %v662
  %v664 = vpop.xlane.xlu0 %663
  %v665 = vmul.f32 %v661, %v490
  %v666 = vmul.f32 %v664, %v490
  %v667 = vadd.f32 %v665, 1e-06
  %v668 = vadd.f32 %v666, 1e-06
  %v669 = vrsqrt.pop %v667
  %v670 = vrsqrt.pop %v668
  %v671 = vmul.f32 %v655, %v669
  %v672 = vmul.f32 %v656, %v670
  %673 = vrot.lane.b32.xlu0 %v523, 24
  %v674 = vpop.permute.xlu0 %673
  %675 = vrot.lane.b32.xlu0 %v524, 24
  %v676 = vpop.permute.xlu0 %675
  %v679 = vmul.f32 %v671, %v674
  %v680 = vmul.f32 %v672, %v676
  %v681 = vpack.c.bf16 %v680, %v679
  %s682 = scalar_lea.vmem %s12, 4
  %v683 = vld [vmem:[%s682] sm:$0xf]
  %v685 = vsel %vm385, %v681, 0
  %vm687 = vcmask 1043456
  %v689 = vsel %vm687, %v683, 0
  %691 = vmatprep.subr.bf16.mxu0 0
  %692 = vmatpush1.bf16.msra.mxu0 %v689
  %693 = vmatprep.subr.bf16.mxu0 0
  %694 = vmatpush1.bf16.msra.mxu0 0
  %695 = vmatprep.subr.bf16.mxu0 0
  %696 = vmatpush1.bf16.msra.mxu0 0
  %697 = vmatprep.subr.bf16.mxu0 0
  %698 = vmatpush1.bf16.msra.mxu0 0
  %699 = vmatprep.subr.bf16.mxu0 0
  %700 = vmatpush1.bf16.msra.mxu0 0
  %701 = vmatprep.subr.bf16.mxu0 0
  %702 = vmatpush1.bf16.msra.mxu0 0
  %703 = vmatprep.subr.bf16.mxu0 0
  %704 = vmatpush1.bf16.msra.mxu0 0
  %705 = vmatprep.subr.bf16.mxu0 0
  %706 = vmatpush1.bf16.msra.mxu0 0
  %707 = vmatprep.subr.bf16.mxu0 0
  %708 = vmatpush1.bf16.msra.mxu0 0
  %709 = vmatprep.subr.bf16.mxu0 0
  %710 = vmatpush1.bf16.msra.mxu0 0
  %711 = vmatprep.subr.bf16.mxu0 0
  %712 = vmatpush1.bf16.msra.mxu0 0
  %713 = vmatprep.subr.bf16.mxu0 0
  %714 = vmatpush1.bf16.msra.mxu0 0
  %715 = vmatprep.subr.bf16.mxu0 0
  %716 = vmatpush1.bf16.msra.mxu0 0
  %717 = vmatprep.subr.bf16.mxu0 0
  %718 = vmatpush1.bf16.msra.mxu0 0
  %719 = vmatprep.subr.bf16.mxu0 0
  %720 = vmatpush1.bf16.msra.mxu0 0
  %721 = vmatprep.subr.bf16.mxu0 0
  %722 = vmatpush1.bf16.msra.mxu0 0
  %723 = vmatprep.mubr.bf16.mxu0 0
  %724 = vmatmul.mubr.bf16.gmra.mrb[0].mxu0 %v685
  %v725 = vpop.f32.mrb[0].mxu0
  %v726 = vadd.f32 0.0, %v725
  %v727 = vpop.f32.mrb[0].mxu0
  %v728 = vpop.f32.mrb[0].mxu0
  %v729 = vadd.f32 0.0, %v728
  %v730 = vpop.f32.mrb[0].mxu0
  %731 = vdwg.mxu0
  %v733 = vsel %vm385, %v535, 0
  %v736 = vsel %vm687, %v536, 0
  %738 = vmatprep.subr.bf16.mxu0 0
  %739 = vmatpush1.bf16.msra.mxu0 %v736
  %740 = vmatprep.subr.bf16.mxu0 0
  %741 = vmatpush1.bf16.msra.mxu0 0
  %742 = vmatprep.subr.bf16.mxu0 0
  %743 = vmatpush1.bf16.msra.mxu0 0
  %744 = vmatprep.subr.bf16.mxu0 0
  %745 = vmatpush1.bf16.msra.mxu0 0
  %746 = vmatprep.subr.bf16.mxu0 0
  %747 = vmatpush1.bf16.msra.mxu0 0
  %748 = vmatprep.subr.bf16.mxu0 0
  %749 = vmatpush1.bf16.msra.mxu0 0
  %750 = vmatprep.subr.bf16.mxu0 0
  %751 = vmatpush1.bf16.msra.mxu0 0
  %752 = vmatprep.subr.bf16.mxu0 0
  %753 = vmatpush1.bf16.msra.mxu0 0
  %754 = vmatprep.subr.bf16.mxu0 0
  %755 = vmatpush1.bf16.msra.mxu0 0
  %756 = vmatprep.subr.bf16.mxu0 0
  %757 = vmatpush1.bf16.msra.mxu0 0
  %758 = vmatprep.subr.bf16.mxu0 0
  %759 = vmatpush1.bf16.msra.mxu0 0
  %760 = vmatprep.subr.bf16.mxu0 0
  %761 = vmatpush1.bf16.msra.mxu0 0
  %762 = vmatprep.subr.bf16.mxu0 0
  %763 = vmatpush1.bf16.msra.mxu0 0
  %764 = vmatprep.subr.bf16.mxu0 0
  %765 = vmatpush1.bf16.msra.mxu0 0
  %766 = vmatprep.subr.bf16.mxu0 0
  %767 = vmatpush1.bf16.msra.mxu0 0
  %768 = vmatprep.subr.bf16.mxu0 0
  %769 = vmatpush1.bf16.msra.mxu0 0
  %770 = vmatprep.mubr.bf16.mxu0 0
  %771 = vmatmul.mubr.bf16.gmra.mrb[0].mxu0 %v733
  %v772 = vpop.f32.mrb[0].mxu0
  %v773 = vadd.f32 %v726, %v772
  %v774 = vpop.f32.mrb[0].mxu0
  %v775 = vpop.f32.mrb[0].mxu0
  %v776 = vadd.f32 %v729, %v775
  %v777 = vpop.f32.mrb[0].mxu0
  %778 = vdwg.mxu0
  %v779 = vmul.f32 %v372, -0.004933717
  %v780 = vmul.f32 %v373, -0.004933717
  %v781 = vmul.f32 %v779, 1.442695
  %v782 = vpow.pop %v781
  %v783 = vmul.f32 %v780, 1.442695
  %v784 = vpow.pop %v783
  %v785 = vsel %vm370, %v782, 0.0
  %v786 = vsel %vm371, %v784, 0.0
  %787 = vrot.lane.b32.xlu0 %v324, 112
  %v788 = vpop.permute.xlu0 %787
  %789 = vrot.lane.b32.xlu0 %v325, 80
  %v790 = vpop.permute.xlu0 %789
  %v792 = vsel %vm385, %v788, 0
  %v795 = vsel %vm385, %v790, 0
  %797 = vmatprep.subr.bf16.mxu0 0
  %798 = vmatpush1.bf16.xpose.msra.mxu0 %v795
  %799 = vmatprep.subr.bf16.mxu0 0
  %800 = vmatpush1.bf16.xpose.msra.mxu0 0
  %801 = vmatprep.subr.bf16.mxu0 0
  %802 = vmatpush1.bf16.xpose.msra.mxu0 0
  %803 = vmatprep.subr.bf16.mxu0 0
  %804 = vmatpush1.bf16.xpose.msra.mxu0 0
  %805 = vmatprep.subr.bf16.mxu0 0
  %806 = vmatpush1.bf16.xpose.msra.mxu0 0
  %807 = vmatprep.subr.bf16.mxu0 0
  %808 = vmatpush1.bf16.xpose.msra.mxu0 0
  %809 = vmatprep.subr.bf16.mxu0 0
  %810 = vmatpush1.bf16.xpose.msra.mxu0 0
  %811 = vmatprep.subr.bf16.mxu0 0
  %812 = vmatpush1.bf16.xpose.msra.mxu0 0
  %813 = vmatprep.subr.bf16.mxu0 0
  %814 = vmatpush1.bf16.xpose.msra.mxu0 0
  %815 = vmatprep.subr.bf16.mxu0 0
  %816 = vmatpush1.bf16.xpose.msra.mxu0 0
  %817 = vmatprep.subr.bf16.mxu0 0
  %818 = vmatpush1.bf16.xpose.msra.mxu0 0
  %819 = vmatprep.subr.bf16.mxu0 0
  %820 = vmatpush1.bf16.xpose.msra.mxu0 0
  %821 = vmatprep.subr.bf16.mxu0 0
  %822 = vmatpush1.bf16.xpose.msra.mxu0 0
  %823 = vmatprep.subr.bf16.mxu0 0
  %824 = vmatpush1.bf16.xpose.msra.mxu0 0
  %825 = vmatprep.subr.bf16.mxu0 0
  %826 = vmatpush1.bf16.xpose.msra.mxu0 0
  %827 = vmatprep.subr.bf16.mxu0 0
  %828 = vmatpush1.bf16.xpose.msra.mxu0 0
  %829 = vmatprep.mubr.bf16.mxu0 0
  %830 = vmatmul.mubr.bf16.gmra.mrb[0].mxu0 %v792
  %v831 = vpop.f32.mrb[0].mxu0
  %v832 = vadd.f32 0.0, %v831
  %v833 = vpop.f32.mrb[0].mxu0
  %v834 = vpop.f32.mrb[0].mxu0
  %v835 = vadd.f32 0.0, %v834
  %v836 = vpop.f32.mrb[0].mxu0
  %837 = vdwg.mxu0
  %v838 = vmul.f32 %v832, %v785
  %v839 = vmul.f32 %v835, %v786
  %v840 = vpack.c.bf16 %v839, %v838
  %841 = vrot.lane.b32.xlu0 %v192, 48
  %v842 = vpop.permute.xlu0 %841
  %v845 = vsel %vm439, %v840, 0
  %847 = vmatprep.subr.bf16.mxu0 0
  %848 = vmatpush1.bf16.msra.mxu0 %v842
  %849 = vmatprep.subr.bf16.mxu0 0
  %850 = vmatpush1.bf16.msra.mxu0 0
  %851 = vmatprep.subr.bf16.mxu0 0
  %852 = vmatpush1.bf16.msra.mxu0 0
  %853 = vmatprep.subr.bf16.mxu0 0
  %854 = vmatpush1.bf16.msra.mxu0 0
  %855 = vmatprep.subr.bf16.mxu0 0
  %856 = vmatpush1.bf16.msra.mxu0 0
  %857 = vmatprep.subr.bf16.mxu0 0
  %858 = vmatpush1.bf16.msra.mxu0 0
  %859 = vmatprep.subr.bf16.mxu0 0
  %860 = vmatpush1.bf16.msra.mxu0 0
  %861 = vmatprep.subr.bf16.mxu0 0
  %862 = vmatpush1.bf16.msra.mxu0 0
  %863 = vmatprep.subr.bf16.mxu0 0
  %864 = vmatpush1.bf16.msra.mxu0 0
  %865 = vmatprep.subr.bf16.mxu0 0
  %866 = vmatpush1.bf16.msra.mxu0 0
  %867 = vmatprep.subr.bf16.mxu0 0
  %868 = vmatpush1.bf16.msra.mxu0 0
  %869 = vmatprep.subr.bf16.mxu0 0
  %870 = vmatpush1.bf16.msra.mxu0 0
  %871 = vmatprep.subr.bf16.mxu0 0
  %872 = vmatpush1.bf16.msra.mxu0 0
  %873 = vmatprep.subr.bf16.mxu0 0
  %874 = vmatpush1.bf16.msra.mxu0 0
  %875 = vmatprep.subr.bf16.mxu0 0
  %876 = vmatpush1.bf16.msra.mxu0 0
  %877 = vmatprep.subr.bf16.mxu0 0
  %878 = vmatpush1.bf16.msra.mxu0 0
  %879 = vmatprep.mubr.bf16.mxu0 0
  %880 = vmatmul.mubr.bf16.gmra.mrb[0].mxu0 %v845
  %v881 = vpop.f32.mrb[0].mxu0
  %v882 = vadd.f32 0.0, %v881
  %v883 = vpop.f32.mrb[0].mxu0
  %v884 = vpop.f32.mrb[0].mxu0
  %v885 = vadd.f32 0.0, %v884
  %v886 = vpop.f32.mrb[0].mxu0
  %887 = vdwg.mxu0
  %v888 = vsel %vm385, %v882, 0.0
  %889 = vadd.xlane.f32.xlu0 %v888
  %v890 = vpop.xlane.xlu0 %889
  %v891 = vsel %vm385, %v885, 0.0
  %892 = vadd.xlane.f32.xlu0 %v891
  %v893 = vpop.xlane.xlu0 %892
  %v894 = vmul.f32 %v890, %v490
  %v895 = vmul.f32 %v893, %v490
  %v896 = vsub.f32 %v882, %v894
  %v897 = vsub.f32 %v885, %v895
  %v898 = vmul.f32 %v896, %v896
  %v899 = vmul.f32 %v897, %v897
  %v900 = vsel %vm385, %v898, 0.0
  %901 = vadd.xlane.f32.xlu0 %v900
  %v902 = vpop.xlane.xlu0 %901
  %v903 = vsel %vm385, %v899, 0.0
  %904 = vadd.xlane.f32.xlu0 %v903
  %v905 = vpop.xlane.xlu0 %904
  %v906 = vmul.f32 %v902, %v490
  %v907 = vmul.f32 %v905, %v490
  %v908 = vadd.f32 %v906, 1e-06
  %v909 = vadd.f32 %v907, 1e-06
  %v910 = vrsqrt.pop %v908
  %v911 = vrsqrt.pop %v909
  %v912 = vmul.f32 %v896, %v910
  %v913 = vmul.f32 %v897, %v911
  %914 = vrot.lane.b32.xlu0 %v523, 16
  %v915 = vpop.permute.xlu0 %914
  %916 = vrot.lane.b32.xlu0 %v524, 16
  %v917 = vpop.permute.xlu0 %916
  %v920 = vmul.f32 %v912, %v915
  %v921 = vmul.f32 %v913, %v917
  %v922 = vpack.c.bf16 %v921, %v920
  %s923 = scalar_lea.vmem %s12, 8
  %v924 = vld [vmem:[%s923] sm:$0xf]
  %v926 = vsel %vm385, %v922, 0
  %v929 = vsel %vm687, %v924, 0
  %931 = vmatprep.subr.bf16.mxu0 0
  %932 = vmatpush1.bf16.msra.mxu0 %v929
  %933 = vmatprep.subr.bf16.mxu0 0
  %934 = vmatpush1.bf16.msra.mxu0 0
  %935 = vmatprep.subr.bf16.mxu0 0
  %936 = vmatpush1.bf16.msra.mxu0 0
  %937 = vmatprep.subr.bf16.mxu0 0
  %938 = vmatpush1.bf16.msra.mxu0 0
  %939 = vmatprep.subr.bf16.mxu0 0
  %940 = vmatpush1.bf16.msra.mxu0 0
  %941 = vmatprep.subr.bf16.mxu0 0
  %942 = vmatpush1.bf16.msra.mxu0 0
  %943 = vmatprep.subr.bf16.mxu0 0
  %944 = vmatpush1.bf16.msra.mxu0 0
  %945 = vmatprep.subr.bf16.mxu0 0
  %946 = vmatpush1.bf16.msra.mxu0 0
  %947 = vmatprep.subr.bf16.mxu0 0
  %948 = vmatpush1.bf16.msra.mxu0 0
  %949 = vmatprep.subr.bf16.mxu0 0
  %950 = vmatpush1.bf16.msra.mxu0 0
  %951 = vmatprep.subr.bf16.mxu0 0
  %952 = vmatpush1.bf16.msra.mxu0 0
  %953 = vmatprep.subr.bf16.mxu0 0
  %954 = vmatpush1.bf16.msra.mxu0 0
  %955 = vmatprep.subr.bf16.mxu0 0
  %956 = vmatpush1.bf16.msra.mxu0 0
  %957 = vmatprep.subr.bf16.mxu0 0
  %958 = vmatpush1.bf16.msra.mxu0 0
  %959 = vmatprep.subr.bf16.mxu0 0
  %960 = vmatpush1.bf16.msra.mxu0 0
  %961 = vmatprep.subr.bf16.mxu0 0
  %962 = vmatpush1.bf16.msra.mxu0 0
  %963 = vmatprep.mubr.bf16.mxu0 0
  %964 = vmatmul.mubr.bf16.gmra.mrb[0].mxu0 %v926
  %v965 = vpop.f32.mrb[0].mxu0
  %v966 = vadd.f32 0.0, %v965
  %v967 = vpop.f32.mrb[0].mxu0
  %v968 = vpop.f32.mrb[0].mxu0
  %v969 = vadd.f32 0.0, %v968
  %v970 = vpop.f32.mrb[0].mxu0
  %971 = vdwg.mxu0
  %v972 = vadd.f32 %v773, %v966
  %v973 = vadd.f32 %v776, %v969
  %v974 = vmul.f32 %v372, -0.001955035
  %v975 = vmul.f32 %v373, -0.001955035
  %v976 = vmul.f32 %v974, 1.442695
  %v977 = vpow.pop %v976
  %v978 = vmul.f32 %v975, 1.442695
  %v979 = vpow.pop %v978
  %v980 = vsel %vm370, %v977, 0.0
  %v981 = vsel %vm371, %v979, 0.0
  %982 = vrot.lane.b32.xlu0 %v324, 104
  %v983 = vpop.permute.xlu0 %982
  %984 = vrot.lane.b32.xlu0 %v325, 72
  %v985 = vpop.permute.xlu0 %984
  %v987 = vsel %vm385, %v983, 0
  %v990 = vsel %vm385, %v985, 0
  %992 = vmatprep.subr.bf16.mxu0 0
  %993 = vmatpush1.bf16.xpose.msra.mxu0 %v990
  %994 = vmatprep.subr.bf16.mxu0 0
  %995 = vmatpush1.bf16.xpose.msra.mxu0 0
  %996 = vmatprep.subr.bf16.mxu0 0
  %997 = vmatpush1.bf16.xpose.msra.mxu0 0
  %998 = vmatprep.subr.bf16.mxu0 0
  %999 = vmatpush1.bf16.xpose.msra.mxu0 0
  %1000 = vmatprep.subr.bf16.mxu0 0
  %1001 = vmatpush1.bf16.xpose.msra.mxu0 0
  %1002 = vmatprep.subr.bf16.mxu0 0
  %1003 = vmatpush1.bf16.xpose.msra.mxu0 0
  %1004 = vmatprep.subr.bf16.mxu0 0
  %1005 = vmatpush1.bf16.xpose.msra.mxu0 0
  %1006 = vmatprep.subr.bf16.mxu0 0
  %1007 = vmatpush1.bf16.xpose.msra.mxu0 0
  %1008 = vmatprep.subr.bf16.mxu0 0
  %1009 = vmatpush1.bf16.xpose.msra.mxu0 0
  %1010 = vmatprep.subr.bf16.mxu0 0
  %1011 = vmatpush1.bf16.xpose.msra.mxu0 0
  %1012 = vmatprep.subr.bf16.mxu0 0
  %1013 = vmatpush1.bf16.xpose.msra.mxu0 0
  %1014 = vmatprep.subr.bf16.mxu0 0
  %1015 = vmatpush1.bf16.xpose.msra.mxu0 0
  %1016 = vmatprep.subr.bf16.mxu0 0
  %1017 = vmatpush1.bf16.xpose.msra.mxu0 0
  %1018 = vmatprep.subr.bf16.mxu0 0
  %1019 = vmatpush1.bf16.xpose.msra.mxu0 0
  %1020 = vmatprep.subr.bf16.mxu0 0
  %1021 = vmatpush1.bf16.xpose.msra.mxu0 0
  %1022 = vmatprep.subr.bf16.mxu0 0
  %1023 = vmatpush1.bf16.xpose.msra.mxu0 0
  %1024 = vmatprep.mubr.bf16.mxu0 0
  %1025 = vmatmul.mubr.bf16.gmra.mrb[0].mxu0 %v987
  %v1026 = vpop.f32.mrb[0].mxu0
  %v1027 = vadd.f32 0.0, %v1026
  %v1028 = vpop.f32.mrb[0].mxu0
  %v1029 = vpop.f32.mrb[0].mxu0
  %v1030 = vadd.f32 0.0, %v1029
  %v1031 = vpop.f32.mrb[0].mxu0
  %1032 = vdwg.mxu0
  %v1033 = vmul.f32 %v1027, %v980
  %v1034 = vmul.f32 %v1030, %v981
  %v1035 = vpack.c.bf16 %v1034, %v1033
  %1036 = vrot.lane.b32.xlu0 %v192, 40
  %v1037 = vpop.permute.xlu0 %1036
  %v1040 = vsel %vm439, %v1035, 0
  %1042 = vmatprep.subr.bf16.mxu0 0
  %1043 = vmatpush1.bf16.msra.mxu0 %v1037
  %1044 = vmatprep.subr.bf16.mxu0 0
  %1045 = vmatpush1.bf16.msra.mxu0 0
  %1046 = vmatprep.subr.bf16.mxu0 0
  %1047 = vmatpush1.bf16.msra.mxu0 0
  %1048 = vmatprep.subr.bf16.mxu0 0
  %1049 = vmatpush1.bf16.msra.mxu0 0
  %1050 = vmatprep.subr.bf16.mxu0 0
  %1051 = vmatpush1.bf16.msra.mxu0 0
  %1052 = vmatprep.subr.bf16.mxu0 0
  %1053 = vmatpush1.bf16.msra.mxu0 0
  %1054 = vmatprep.subr.bf16.mxu0 0
  %1055 = vmatpush1.bf16.msra.mxu0 0
  %1056 = vmatprep.subr.bf16.mxu0 0
  %1057 = vmatpush1.bf16.msra.mxu0 0
  %1058 = vmatprep.subr.bf16.mxu0 0
  %1059 = vmatpush1.bf16.msra.mxu0 0
  %1060 = vmatprep.subr.bf16.mxu0 0
  %1061 = vmatpush1.bf16.msra.mxu0 0
  %1062 = vmatprep.subr.bf16.mxu0 0
  %1063 = vmatpush1.bf16.msra.mxu0 0
  %1064 = vmatprep.subr.bf16.mxu0 0
  %1065 = vmatpush1.bf16.msra.mxu0 0
  %1066 = vmatprep.subr.bf16.mxu0 0
  %1067 = vmatpush1.bf16.msra.mxu0 0
  %1068 = vmatprep.subr.bf16.mxu0 0
  %1069 = vmatpush1.bf16.msra.mxu0 0
  %1070 = vmatprep.subr.bf16.mxu0 0
  %1071 = vmatpush1.bf16.msra.mxu0 0
  %1072 = vmatprep.subr.bf16.mxu0 0
  %1073 = vmatpush1.bf16.msra.mxu0 0
  %1074 = vmatprep.mubr.bf16.mxu0 0
  %1075 = vmatmul.mubr.bf16.gmra.mrb[0].mxu0 %v1040
  %v1076 = vpop.f32.mrb[0].mxu0
  %v1077 = vadd.f32 0.0, %v1076
  %v1078 = vpop.f32.mrb[0].mxu0
  %v1079 = vpop.f32.mrb[0].mxu0
  %v1080 = vadd.f32 0.0, %v1079
  %v1081 = vpop.f32.mrb[0].mxu0
  %1082 = vdwg.mxu0
  %v1083 = vsel %vm385, %v1077, 0.0
  %1084 = vadd.xlane.f32.xlu0 %v1083
  %v1085 = vpop.xlane.xlu0 %1084
  %v1086 = vsel %vm385, %v1080, 0.0
  %1087 = vadd.xlane.f32.xlu0 %v1086
  %v1088 = vpop.xlane.xlu0 %1087
  %v1089 = vmul.f32 %v1085, %v490
  %v1090 = vmul.f32 %v1088, %v490
  %v1091 = vsub.f32 %v1077, %v1089
  %v1092 = vsub.f32 %v1080, %v1090
  %v1093 = vmul.f32 %v1091, %v1091
  %v1094 = vmul.f32 %v1092, %v1092
  %v1095 = vsel %vm385, %v1093, 0.0
  %1096 = vadd.xlane.f32.xlu0 %v1095
  %v1097 = vpop.xlane.xlu0 %1096
  %v1098 = vsel %vm385, %v1094, 0.0
  %1099 = vadd.xlane.f32.xlu0 %v1098
  %v1100 = vpop.xlane.xlu0 %1099
  %v1101 = vmul.f32 %v1097, %v490
  %v1102 = vmul.f32 %v1100, %v490
  %v1103 = vadd.f32 %v1101, 1e-06
  %v1104 = vadd.f32 %v1102, 1e-06
  %v1105 = vrsqrt.pop %v1103
  %v1106 = vrsqrt.pop %v1104
  %v1107 = vmul.f32 %v1091, %v1105
  %v1108 = vmul.f32 %v1092, %v1106
  %1109 = vrot.lane.b32.xlu0 %v523, 8
  %v1110 = vpop.permute.xlu0 %1109
  %1111 = vrot.lane.b32.xlu0 %v524, 8
  %v1112 = vpop.permute.xlu0 %1111
  %v1115 = vmul.f32 %v1107, %v1110
  %v1116 = vmul.f32 %v1108, %v1112
  %v1117 = vpack.c.bf16 %v1116, %v1115
  %s1118 = scalar_lea.vmem %s12, 12
  %v1119 = vld [vmem:[%s1118] sm:$0xf]
  %v1121 = vsel %vm385, %v1117, 0
  %v1124 = vsel %vm687, %v1119, 0
  %1126 = vmatprep.subr.bf16.mxu0 0
  %1127 = vmatpush1.bf16.msra.mxu0 %v1124
  %1128 = vmatprep.subr.bf16.mxu0 0
  %1129 = vmatpush1.bf16.msra.mxu0 0
  %1130 = vmatprep.subr.bf16.mxu0 0
  %1131 = vmatpush1.bf16.msra.mxu0 0
  %1132 = vmatprep.subr.bf16.mxu0 0
  %1133 = vmatpush1.bf16.msra.mxu0 0
  %1134 = vmatprep.subr.bf16.mxu0 0
  %1135 = vmatpush1.bf16.msra.mxu0 0
  %1136 = vmatprep.subr.bf16.mxu0 0
  %1137 = vmatpush1.bf16.msra.mxu0 0
  %1138 = vmatprep.subr.bf16.mxu0 0
  %1139 = vmatpush1.bf16.msra.mxu0 0
  %1140 = vmatprep.subr.bf16.mxu0 0
  %1141 = vmatpush1.bf16.msra.mxu0 0
  %1142 = vmatprep.subr.bf16.mxu0 0
  %1143 = vmatpush1.bf16.msra.mxu0 0
  %1144 = vmatprep.subr.bf16.mxu0 0
  %1145 = vmatpush1.bf16.msra.mxu0 0
  %1146 = vmatprep.subr.bf16.mxu0 0
  %1147 = vmatpush1.bf16.msra.mxu0 0
  %1148 = vmatprep.subr.bf16.mxu0 0
  %1149 = vmatpush1.bf16.msra.mxu0 0
  %1150 = vmatprep.subr.bf16.mxu0 0
  %1151 = vmatpush1.bf16.msra.mxu0 0
  %1152 = vmatprep.subr.bf16.mxu0 0
  %1153 = vmatpush1.bf16.msra.mxu0 0
  %1154 = vmatprep.subr.bf16.mxu0 0
  %1155 = vmatpush1.bf16.msra.mxu0 0
  %1156 = vmatprep.subr.bf16.mxu0 0
  %1157 = vmatpush1.bf16.msra.mxu0 0
  %1158 = vmatprep.mubr.bf16.mxu0 0
  %1159 = vmatmul.mubr.bf16.gmra.mrb[0].mxu0 %v1121
  %v1160 = vpop.f32.mrb[0].mxu0
  %v1161 = vadd.f32 0.0, %v1160
  %v1162 = vpop.f32.mrb[0].mxu0
  %v1163 = vpop.f32.mrb[0].mxu0
  %v1164 = vadd.f32 0.0, %v1163
  %v1165 = vpop.f32.mrb[0].mxu0
  %1166 = vdwg.mxu0
  %v1167 = vadd.f32 %v972, %v1161
  %v1168 = vadd.f32 %v973, %v1164
  %v1169 = vadd.f32 %v66, %v1167
  %v1170 = vadd.f32 %v67, %v1168
  %v1171 = vld [vmem:[%s13] sm:$0x1]
  %v1173 = vlaneseq
  %v1174 = vshrl.u32 %v1173, 7
  %v1175 = vsub.s32 0, %v1174
  %v1176 = vrot.slane %v1171, %v1175
  %v1178 = vadd.f32 %v1169, %v1176
  %v1179 = vadd.f32 %v1170, %v1176
  %v1180 = vsel %vm68, %v1178, 0.0
  %1181 = vadd.xlane.f32.xlu0 %v1180
  %v1182 = vpop.xlane.xlu0 %1181
  %v1183 = vsel %vm68, %v1179, 0.0
  %1184 = vadd.xlane.f32.xlu0 %v1183
  %v1185 = vpop.xlane.xlu0 %1184
  %v1186 = vmul.f32 %v1182, %v75
  %v1187 = vmul.f32 %v1185, %v75
  %v1188 = vsub.f32 %v1178, %v1186
  %v1189 = vsub.f32 %v1179, %v1187
  %v1190 = vmul.f32 %v1188, %v1188
  %v1191 = vmul.f32 %v1189, %v1189
  %v1192 = vsel %vm68, %v1190, 0.0
  %1193 = vadd.xlane.f32.xlu0 %v1192
  %v1194 = vpop.xlane.xlu0 %1193
  %v1195 = vsel %vm68, %v1191, 0.0
  %1196 = vadd.xlane.f32.xlu0 %v1195
  %v1197 = vpop.xlane.xlu0 %1196
  %v1198 = vmul.f32 %v1194, %v75
  %v1199 = vmul.f32 %v1197, %v75
  %v1200 = vadd.f32 %v1198, 1e-06
  %v1201 = vadd.f32 %v1199, 1e-06
  %v1202 = vrsqrt.pop %v1200
  %v1203 = vrsqrt.pop %v1201
  %v1204 = vmul.f32 %v1188, %v1202
  %v1205 = vmul.f32 %v1189, %v1203
  %v1206 = vld [vmem:[%s14] sm:$0x1]
  %v1208 = vlaneseq
  %v1209 = vshrl.u32 %v1208, 7
  %v1210 = vsub.s32 0, %v1209
  %v1211 = vrot.slane %v1206, %v1210
  %v1213 = vmul.f32 %v1204, %v1211
  %v1214 = vmul.f32 %v1205, %v1211
  %v1215 = vld [vmem:[%s15] sm:$0x1]
  %v1217 = vlaneseq
  %v1218 = vshrl.u32 %v1217, 7
  %v1219 = vsub.s32 0, %v1218
  %v1220 = vrot.slane %v1215, %v1219
  %v1222 = vadd.f32 %v1213, %v1220
  %v1223 = vadd.f32 %v1214, %v1220
  %v1224 = vpack.c.bf16 %v1223, %v1222
  %v1225 = vld [vmem:[%s16] sm:$0xf]
  %v1226 = vld [vmem:[%s16 + $0x4] sm:$0xf]
  %v1227 = vld [vmem:[%s16 + $0x8] sm:$0xf]
  %v1228 = vld [vmem:[%s16 + $0xc] sm:$0xf]
  %v1229 = vld [vmem:[%s17] sm:$0x1]
  %v1231 = vlaneseq
  %v1232 = vshrl.u32 %v1231, 7
  %v1233 = vsub.s32 0, %v1232
  %v1234 = vrot.slane %v1229, %v1233
  %v1240 = vunpack.c.l.b16 %v1225
  %v1241 = vunpack.c.l.b16 %v1226
  %v1242 = vunpack.c.l.b16 %v1227
  %v1243 = vunpack.c.l.b16 %v1228
  %v1244 = vpack.c.b16 %v1241, %v1240
  %v1245 = vpack.c.b16 %v1243, %v1242
  %v1249 = vsel %vm68, %v1224, 0
  %1251 = vmatprep.subr.bf16.mxu0 0
  %1252 = vmatpush1.bf16.msra.mxu0 %v1244
  %1253 = vmatprep.subr.bf16.mxu0 0
  %1254 = vmatpush1.bf16.msra.mxu0 %v1245
  %1255 = vmatprep.subr.bf16.mxu0 0
  %1256 = vmatpush1.bf16.msra.mxu0 0
  %1257 = vmatprep.subr.bf16.mxu0 0
  %1258 = vmatpush1.bf16.msra.mxu0 0
  %1259 = vmatprep.subr.bf16.mxu0 0
  %1260 = vmatpush1.bf16.msra.mxu0 0
  %1261 = vmatprep.subr.bf16.mxu0 0
  %1262 = vmatpush1.bf16.msra.mxu0 0
  %1263 = vmatprep.subr.bf16.mxu0 0
  %1264 = vmatpush1.bf16.msra.mxu0 0
  %1265 = vmatprep.subr.bf16.mxu0 0
  %1266 = vmatpush1.bf16.msra.mxu0 0
  %1267 = vmatprep.subr.bf16.mxu0 0
  %1268 = vmatpush1.bf16.msra.mxu0 0
  %1269 = vmatprep.subr.bf16.mxu0 0
  %1270 = vmatpush1.bf16.msra.mxu0 0
  %1271 = vmatprep.subr.bf16.mxu0 0
  %1272 = vmatpush1.bf16.msra.mxu0 0
  %1273 = vmatprep.subr.bf16.mxu0 0
  %1274 = vmatpush1.bf16.msra.mxu0 0
  %1275 = vmatprep.subr.bf16.mxu0 0
  %1276 = vmatpush1.bf16.msra.mxu0 0
  %1277 = vmatprep.subr.bf16.mxu0 0
  %1278 = vmatpush1.bf16.msra.mxu0 0
  %1279 = vmatprep.subr.bf16.mxu0 0
  %1280 = vmatpush1.bf16.msra.mxu0 0
  %1281 = vmatprep.subr.bf16.mxu0 0
  %1282 = vmatpush1.bf16.msra.mxu0 0
  %1283 = vmatprep.mubr.bf16.mxu0 0
  %1284 = vmatmul.mubr.bf16.gmra.mrb[0].mxu0 %v1249
  %v1285 = vpop.f32.mrb[0].mxu0
  %v1286 = vadd.f32 %v1234, %v1285
  %v1287 = vpop.f32.mrb[0].mxu0
  %v1288 = vpop.f32.mrb[0].mxu0
  %v1289 = vadd.f32 %v1234, %v1288
  %v1290 = vpop.f32.mrb[0].mxu0
  %1291 = vdwg.mxu0
  %v1292 = vxor.u32 %v1286, 2147483648
  %v1293 = vxor.u32 %v1289, 2147483648
  %v1294 = vmul.f32 %v1292, 1.442695
  %v1295 = vpow.pop %v1294
  %v1296 = vmul.f32 %v1293, 1.442695
  %v1297 = vpow.pop %v1296
  %v1298 = vadd.f32 %v1295, 1.0
  %v1299 = vadd.f32 %v1297, 1.0
  %v1300 = vrcp.pop %v1298
  %v1301 = vmul.f32 1.0, %v1300
  %v1302 = vrcp.pop %v1299
  %v1303 = vmul.f32 1.0, %v1302
  %v1304 = vmul.f32 %v1286, %v1301
  %v1305 = vmul.f32 %v1289, %v1303
  %v1306 = vpack.c.bf16 %v1305, %v1304
  %v1307 = vld [vmem:[%s18] sm:$0xf]
  %v1308 = vld [vmem:[%s18 + $0x4] sm:$0xf]
  %v1309 = vld [vmem:[%s18 + $0x8] sm:$0xf]
  %v1310 = vld [vmem:[%s18 + $0xc] sm:$0xf]
  %v1311 = vld [vmem:[%s18 + $0x10] sm:$0xf]
  %v1312 = vld [vmem:[%s18 + $0x14] sm:$0xf]
  %v1313 = vld [vmem:[%s18 + $0x18] sm:$0xf]
  %v1314 = vld [vmem:[%s18 + $0x1c] sm:$0xf]
  %v1315 = vld [vmem:[%s18 + $0x20] sm:$0xf]
  %v1316 = vld [vmem:[%s18 + $0x24] sm:$0xf]
  %v1317 = vld [vmem:[%s18 + $0x28] sm:$0xf]
  %v1318 = vld [vmem:[%s18 + $0x2c] sm:$0xf]
  %v1319 = vld [vmem:[%s18 + $0x30] sm:$0xf]
  %v1320 = vld [vmem:[%s18 + $0x34] sm:$0xf]
  %v1321 = vld [vmem:[%s18 + $0x38] sm:$0xf]
  %v1322 = vld [vmem:[%s18 + $0x3c] sm:$0xf]
  %v1323 = vld [vmem:[%s19] sm:$0x1]
  %v1325 = vlaneseq
  %v1326 = vshrl.u32 %v1325, 7
  %v1327 = vsub.s32 0, %v1326
  %v1328 = vrot.slane %v1323, %v1327
  %v1346 = vunpack.c.l.b16 %v1307
  %v1347 = vunpack.c.l.b16 %v1308
  %v1348 = vunpack.c.l.b16 %v1309
  %v1349 = vunpack.c.l.b16 %v1310
  %v1350 = vunpack.c.l.b16 %v1311
  %v1351 = vunpack.c.l.b16 %v1312
  %v1352 = vunpack.c.l.b16 %v1313
  %v1353 = vunpack.c.l.b16 %v1314
  %v1354 = vunpack.c.l.b16 %v1315
  %v1355 = vunpack.c.l.b16 %v1316
  %v1356 = vunpack.c.l.b16 %v1317
  %v1357 = vunpack.c.l.b16 %v1318
  %v1358 = vunpack.c.l.b16 %v1319
  %v1359 = vunpack.c.l.b16 %v1320
  %v1360 = vunpack.c.l.b16 %v1321
  %v1361 = vunpack.c.l.b16 %v1322
  %v1362 = vpack.c.b16 %v1347, %v1346
  %v1363 = vpack.c.b16 %v1349, %v1348
  %v1364 = vpack.c.b16 %v1351, %v1350
  %v1365 = vpack.c.b16 %v1353, %v1352
  %v1366 = vpack.c.b16 %v1355, %v1354
  %v1367 = vpack.c.b16 %v1357, %v1356
  %v1368 = vpack.c.b16 %v1359, %v1358
  %v1369 = vpack.c.b16 %v1361, %v1360
  %1378 = vmatprep.subr.bf16.mxu0 0
  %1379 = vmatpush1.bf16.msra.mxu0 %v1362
  %1380 = vmatprep.subr.bf16.mxu0 0
  %1381 = vmatpush1.bf16.msra.mxu0 %v1363
  %1382 = vmatprep.subr.bf16.mxu0 0
  %1383 = vmatpush1.bf16.msra.mxu0 %v1364
  %1384 = vmatprep.subr.bf16.mxu0 0
  %1385 = vmatpush1.bf16.msra.mxu0 %v1365
  %1386 = vmatprep.subr.bf16.mxu0 0
  %1387 = vmatpush1.bf16.msra.mxu0 %v1366
  %1388 = vmatprep.subr.bf16.mxu0 0
  %1389 = vmatpush1.bf16.msra.mxu0 %v1367
  %1390 = vmatprep.subr.bf16.mxu0 0
  %1391 = vmatpush1.bf16.msra.mxu0 %v1368
  %1392 = vmatprep.subr.bf16.mxu0 0
  %1393 = vmatpush1.bf16.msra.mxu0 %v1369
  %1394 = vmatprep.subr.bf16.mxu0 0
  %1395 = vmatpush1.bf16.msra.mxu0 0
  %1396 = vmatprep.subr.bf16.mxu0 0
  %1397 = vmatpush1.bf16.msra.mxu0 0
  %1398 = vmatprep.subr.bf16.mxu0 0
  %1399 = vmatpush1.bf16.msra.mxu0 0
  %1400 = vmatprep.subr.bf16.mxu0 0
  %1401 = vmatpush1.bf16.msra.mxu0 0
  %1402 = vmatprep.subr.bf16.mxu0 0
  %1403 = vmatpush1.bf16.msra.mxu0 0
  %1404 = vmatprep.subr.bf16.mxu0 0
  %1405 = vmatpush1.bf16.msra.mxu0 0
  %1406 = vmatprep.subr.bf16.mxu0 0
  %1407 = vmatpush1.bf16.msra.mxu0 0
  %1408 = vmatprep.subr.bf16.mxu0 0
  %1409 = vmatpush1.bf16.msra.mxu0 0
  %1410 = vmatprep.mubr.bf16.mxu0 0
  %1411 = vmatmul.mubr.bf16.gmra.mrb[0].mxu0 %v1306
  %v1412 = vpop.f32.mrb[0].mxu0
  %v1413 = vadd.f32 %v1328, %v1412
  %v1414 = vpop.f32.mrb[0].mxu0
  %v1415 = vpop.f32.mrb[0].mxu0
  %v1416 = vadd.f32 %v1328, %v1415
  %v1417 = vpop.f32.mrb[0].mxu0
  %1418 = vdwg.mxu0
  %v1419 = vadd.f32 %v1178, %v1413
  %v1420 = vadd.f32 %v1179, %v1416
  %1421 = vst.msk [vmem:[%s20] sm:$0xff] %vm68, %v1419
  %1422 = vst.msk [vmem:[%s20 + $0x8] sm:$0xff] %vm68, %v1420
  // Predicated region
  $region82: #{_lambda_.3} parent=0 // pred_check
    _
  $region83: #{_lambda_.3} parent=0 // pred_check_branch
    %1424 = sbr.rel (0) target = $region85
  $region84: #{_lambda_.3} parent=0 // pred_region
    _
  $region85: #{_lambda_.3} parent=0 // pred_fallthru
    _
  // Predicated region
  $region86: #{_lambda_.3} parent=0 // pred_check
    _
  $region87: #{_lambda_.3} parent=0 // pred_check_branch
    %1426 = sbr.rel (0) target = $region89
  $region88: #{_lambda_.3} parent=0 // pred_region
    _
  $region89: #{_lambda_.3} parent=0 // pred_fallthru
    _

</llo_original>
